<compile_context>
chip_gen: v6e
topology: v6e:2x2x1
jax: 0.10.0
libtpu: 0.0.40
codegen_flags: <defaults>
</compile_context>

<pallas_src>
import functools

import jax
import jax.numpy as jnp
from jax.experimental import pallas as pl
from jax.experimental.pallas import tpu as pltpu

IN_FEATURES = 28 * 28      # 784
HIDDEN = 128
OUT_FEATURES = 10
OUT_PAD = 128              # lane-dense padded output width


def mlp_kernel(x_ref, w1_ref, b1_ref, w2_ref, b2_ref, o_ref):
    # f32 -> bf16 cast in-kernel (VPU op, hidden under the x-tile DMA).
    x = x_ref[...].astype(jnp.bfloat16)
    # fc1: (tile_b, 784) bf16 @ (784, 128) bf16 -> f32 accumulate on the MXU.
    h = jnp.dot(x, w1_ref[...], preferred_element_type=jnp.float32)
    # Bias + ReLU on the VPU (free filler while DMA dominates).
    h = jnp.maximum(h + b1_ref[...], 0.0)
    # fc2: (tile_b, 128) bf16 @ (128, 128) bf16 -> f32 accumulate, f32 bias.
    out = jnp.dot(h.astype(jnp.bfloat16), w2_ref[...],
                  preferred_element_type=jnp.float32)
    out = out + b2_ref[...]
    # Lane-dense (tile_b, 128) bf16 store; real logits are columns [:10].
    o_ref[...] = out.astype(o_ref.dtype)


def prepare_params(w1, b1, w2, b2):
    """One-time weight prep (cache the result): bf16 weights, f32 biases,
    fc2 lane-padded to OUT_PAD so the kernel writes full 128-wide blocks."""
    w1_b = w1.astype(jnp.bfloat16)
    b1_f = jnp.reshape(b1, (1, HIDDEN)).astype(jnp.float32)
    w2_p = jnp.pad(w2, ((0, 0), (0, OUT_PAD - OUT_FEATURES))).astype(jnp.bfloat16)
    b2_p = jnp.pad(jnp.reshape(b2, (1, OUT_FEATURES)),
                   ((0, 0), (0, OUT_PAD - OUT_FEATURES))).astype(jnp.float32)
    return w1_b, b1_f, w2_p, b2_p


def _pick_tile_b(B, tile_b):
    """Batch tile: multiple of 8, <= requested tile, and small enough that the
    grid has >=2 steps when B allows it (keeps both v7x TensorCores busy)."""
    if B <= 8:
        return 8
    half = -(-B // 2)                 # ceil(B / 2)
    half = ((half + 7) // 8) * 8      # round up to a multiple of 8
    return max(8, min(tile_b, half))


@functools.partial(jax.jit, static_argnames=("tile_b",))
def net_forward(x, w1_b, b1_f, w2_p, b2_p, *, tile_b=512):
    """x: (B, 784) f32. Params from prepare_params(). Returns (B, 10) bf16 logits.

    The final column slice stays inside this jit so it fuses with downstream
    consumers instead of materializing a separate HBM copy.
    """
    B = x.shape[0]
    tb = _pick_tile_b(B, tile_b)
    grid = (pl.cdiv(B, tb),)          # partial last block masked by Pallas

    out = pl.pallas_call(
        mlp_kernel,
        out_shape=jax.ShapeDtypeStruct((B, OUT_PAD), jnp.bfloat16),
        grid_spec=pltpu.PrefetchScalarGridSpec(
            num_scalar_prefetch=0,
            grid=grid,
            in_specs=[
                pl.BlockSpec((tb, IN_FEATURES), lambda i: (i, 0)),   # x tile streams (f32)
                pl.BlockSpec((IN_FEATURES, HIDDEN), lambda i: (0, 0)),  # w1 resident
                pl.BlockSpec((1, HIDDEN), lambda i: (0, 0)),            # b1 resident
                pl.BlockSpec((HIDDEN, OUT_PAD), lambda i: (0, 0)),      # w2 resident
                pl.BlockSpec((1, OUT_PAD), lambda i: (0, 0)),           # b2 resident
            ],
            out_specs=pl.BlockSpec((tb, OUT_PAD), lambda i: (i, 0)),
        ),
        compiler_params=pltpu.CompilerParams(
            dimension_semantics=("parallel",),   # batch tiles shard across v7x's 2 TCs
        ),
    )(x, w1_b, b1_f, w2_p, b2_p)

    return out[:, :OUT_FEATURES]


def init_params(key):
    # Deterministic synthetic init mimicking nn.Linear's uniform(-1/sqrt(fan_in), ...)
    k1, k2, k3, k4 = jax.random.split(key, 4)
    bound1 = 1.0 / jnp.sqrt(IN_FEATURES)
    bound2 = 1.0 / jnp.sqrt(HIDDEN)
    w1 = jax.random.uniform(k1, (IN_FEATURES, HIDDEN), jnp.float32, -bound1, bound1)
    b1 = jax.random.uniform(k2, (1, HIDDEN), jnp.float32, -bound1, bound1)
    w2 = jax.random.uniform(k3, (HIDDEN, OUT_FEATURES), jnp.float32, -bound2, bound2)
    b2 = jax.random.uniform(k4, (1, OUT_FEATURES), jnp.float32, -bound2, bound2)
    return w1, b1, w2, b2


if __name__ == "__main__":
    key = jax.random.PRNGKey(0)
    kx, kp = jax.random.split(key)

    # B not a multiple of the tile on purpose: exercises the masked partial
    # last block and gives a 2-step grid (pipelined / megacore-shardable).
    B = 200
    x = jax.random.normal(kx, (B, IN_FEATURES), jnp.float32)
    w1, b1, w2, b2 = init_params(kp)

    # One-time weight prep (would be cached alongside the params in real use).
    w1_b, b1_f, w2_p, b2_p = prepare_params(w1, b1, w2, b2)

    out = net_forward(x, w1_b, b1_f, w2_p, b2_p)
    out = jax.block_until_ready(out)

    # Reference check against plain JAX (f32). Kernel uses bf16 weights/inputs
    # with f32 accumulation and a bf16 output store, so allow bf16 tolerance.
    ref = jnp.maximum(x @ w1 + b1, 0.0) @ w2 + b2
    assert out.shape == (B, OUT_FEATURES)
    assert jnp.allclose(out.astype(jnp.float32), ref, atol=5e-2, rtol=5e-2), (
        float(jnp.max(jnp.abs(out.astype(jnp.float32) - ref))))

    print("KERNEL_OK")
</pallas_src>

<mosaic_0001>
module attributes {stable_mosaic.version = 11 : i64} {
  func.func @mlp_kernel(%arg0: i32, %arg1: memref<104x784xf32, #tpu.memory_space<vmem>>, %arg2: memref<784x128xbf16, #tpu.memory_space<vmem>>, %arg3: memref<1x128xf32, #tpu.memory_space<vmem>>, %arg4: memref<128x128xbf16, #tpu.memory_space<vmem>>, %arg5: memref<1x128xf32, #tpu.memory_space<vmem>>, %arg6: memref<104x128xbf16, #tpu.memory_space<vmem>>) attributes {dimension_semantics = [#tpu.dimension_semantics<parallel>], iteration_bounds = array<i64: 2>, scalar_prefetch = 0 : i64, scratch_operands = 0 : i64, tpu.core_type = #tpu.core_type<tc>, window_params = [{transform_indices = @transform_0, window_bounds = array<i64: 104, 784>}, {pipeline_mode = #tpu.pipeline_mode<synchronous>, transform_indices = @transform_1, window_bounds = array<i64: 784, 128>}, {pipeline_mode = #tpu.pipeline_mode<synchronous>, transform_indices = @transform_2, window_bounds = array<i64: 1, 128>}, {pipeline_mode = #tpu.pipeline_mode<synchronous>, transform_indices = @transform_3, window_bounds = array<i64: 128, 128>}, {pipeline_mode = #tpu.pipeline_mode<synchronous>, transform_indices = @transform_4, window_bounds = array<i64: 1, 128>}, {transform_indices = @transform_5, window_bounds = array<i64: 104, 128>}]} {
    %c0 = arith.constant 0 : index
    %c0_0 = arith.constant 0 : index
    %0 = vector.load %arg1[%c0, %c0_0] : memref<104x784xf32, #tpu.memory_space<vmem>>, vector<104x784xf32>
    %1 = arith.truncf %0 : vector<104x784xf32> to vector<104x784xbf16>
    %c0_1 = arith.constant 0 : index
    %c0_2 = arith.constant 0 : index
    %2 = vector.load %arg2[%c0_1, %c0_2] : memref<784x128xbf16, #tpu.memory_space<vmem>>, vector<784x128xbf16>
    %cst = arith.constant dense<0.000000e+00> : vector<104x128xf32>
    %3 = tpu.matmul %1, %2, %cst {dimension_numbers = #tpu.dot_dimension_numbers<[1], [0], [0], [1], [0, 0, 1, 1], [], []>} : vector<104x784xbf16>, vector<784x128xbf16>, vector<104x128xf32> -> vector<104x128xf32>
    %c0_3 = arith.constant 0 : index
    %c0_4 = arith.constant 0 : index
    %4 = vector.load %arg3[%c0_3, %c0_4] : memref<1x128xf32, #tpu.memory_space<vmem>>, vector<1x128xf32>
    %5 = vector.broadcast %4 : vector<1x128xf32> to vector<104x128xf32>
    %6 = arith.addf %3, %5 : vector<104x128xf32>
    %cst_5 = arith.constant 0.000000e+00 : f32
    %7 = vector.broadcast %cst_5 : f32 to vector<104x128xf32>
    %8 = arith.maximumf %6, %7 : vector<104x128xf32>
    %9 = arith.truncf %8 : vector<104x128xf32> to vector<104x128xbf16>
    %c0_6 = arith.constant 0 : index
    %c0_7 = arith.constant 0 : index
    %10 = vector.load %arg4[%c0_6, %c0_7] : memref<128x128xbf16, #tpu.memory_space<vmem>>, vector<128x128xbf16>
    %cst_8 = arith.constant dense<0.000000e+00> : vector<104x128xf32>
    %11 = tpu.matmul %9, %10, %cst_8 {dimension_numbers = #tpu.dot_dimension_numbers<[1], [0], [0], [1], [0, 0, 1, 1], [], []>} : vector<104x128xbf16>, vector<128x128xbf16>, vector<104x128xf32> -> vector<104x128xf32>
    %c0_9 = arith.constant 0 : index
    %c0_10 = arith.constant 0 : index
    %12 = vector.load %arg5[%c0_9, %c0_10] : memref<1x128xf32, #tpu.memory_space<vmem>>, vector<1x128xf32>
    %13 = vector.broadcast %12 : vector<1x128xf32> to vector<104x128xf32>
    %14 = arith.addf %11, %13 : vector<104x128xf32>
    %15 = arith.truncf %14 : vector<104x128xf32> to vector<104x128xbf16>
    %c0_11 = arith.constant 0 : index
    %c0_12 = arith.constant 0 : index
    %16 = vector.load %arg6[%c0_11, %c0_12] : memref<104x128xbf16, #tpu.memory_space<vmem>>, vector<104x128xbf16>
    tpu.vector_store %arg6[%c0_11, %c0_12], %15 {strides = array<i32>} : memref<104x128xbf16, #tpu.memory_space<vmem>>, vector<104x128xbf16>,
    return
  }
  func.func @transform_0(%arg0: i32) -> (i32, i32) {
    %c0_i32 = arith.constant 0 : i32
    %c0_i32_0 = arith.constant 0 : i32
    return %arg0, %c0_i32 : i32, i32
  }
  func.func @transform_1(%arg0: i32) -> (i32, i32) {
    %c0_i32 = arith.constant 0 : i32
    %c0_i32_0 = arith.constant 0 : i32
    %c0_i32_1 = arith.constant 0 : i32
    return %c0_i32, %c0_i32_0 : i32, i32
  }
  func.func @transform_2(%arg0: i32) -> (i32, i32) {
    %c0_i32 = arith.constant 0 : i32
    %c0_i32_0 = arith.constant 0 : i32
    %c0_i32_1 = arith.constant 0 : i32
    return %c0_i32, %c0_i32_0 : i32, i32
  }
  func.func @transform_3(%arg0: i32) -> (i32, i32) {
    %c0_i32 = arith.constant 0 : i32
    %c0_i32_0 = arith.constant 0 : i32
    %c0_i32_1 = arith.constant 0 : i32
    return %c0_i32, %c0_i32_0 : i32, i32
  }
  func.func @transform_4(%arg0: i32) -> (i32, i32) {
    %c0_i32 = arith.constant 0 : i32
    %c0_i32_0 = arith.constant 0 : i32
    %c0_i32_1 = arith.constant 0 : i32
    return %c0_i32, %c0_i32_0 : i32, i32
  }
  func.func @transform_5(%arg0: i32) -> (i32, i32) {
    %c0_i32 = arith.constant 0 : i32
    %c0_i32_0 = arith.constant 0 : i32
    return %arg0, %c0_i32 : i32, i32
  }
}

</mosaic_0001>

<llo_original>
// kernel: net_forward.1
$region0: #{net_forward.1}
  #allocation0 [shape = 'u32[]', space=smem, size = 0x4, offset = 0x4, fixed_abs, tag = 'smem constant byte address 0x4 - core index']
  #allocation1 [shape = 'u32[144,128]{1,0:T(1,128)}', space=vmem, size = 0x12000, scoped, tag = 'internal scratch']
  %s0 = inlined_call_operand.hbm [shape: f32[200,784], index: 0, kind: input, shape index: {}]
  %s1 = inlined_call_operand.hbm [shape: bf16[784,128], index: 1, kind: input, shape index: {}]
  %s2 = inlined_call_operand.vmem [shape: f32[1,128], index: 2, kind: input, shape index: {}]
  %s3 = inlined_call_operand.hbm [shape: bf16[128,128], index: 3, kind: input, shape index: {}]
  %s4 = inlined_call_operand.vmem [shape: f32[1,128], index: 4, kind: input, shape index: {}]
  %s5 = inlined_call_operand.vmem [shape: bf16[200,128], index: 5, kind: output, shape index: {}]
  %s6 = sld [smem:[#allocation0]]
  $region109: #{net_forward.1} parent=0
    _
  %s8 = ssub.s32 1, %s6
  %s9 = scalar_select 0, %s8, %s6
  $region1: #{net_forward.1} parent=0
    #allocation2 [shape = 'u8[745472]{0}', space=vmem, size = 0xb6000, scoped, tag = 'input window, operand 0']
    #allocation3 [shape = 's32[2]{0}', space=sflag, size = 0x8, scoped, tag = 'scoped memory for net_forward.1']
    #allocation4 [shape = 'u8[200704]{0}', space=vmem, size = 0x31000, scoped, tag = 'input window, operand 1, single buffered']
    #allocation5 [shape = 's32[1]{0}', space=sflag, size = 0x4, scoped, tag = 'scoped memory for net_forward.1']
    #allocation6 [shape = 'u8[32768]{0}', space=vmem, size = 0x8000, scoped, tag = 'input window, operand 3, single buffered']
    #allocation7 [shape = 'u8[53248]{0}', space=vmem, size = 0xd000, scoped, tag = 'output window, operand 0']
    %10 = vsyncpa [#allocation3], 0
    %s11 = scalar_lea.sflag [#allocation3], 1
    %12 = vsyncpa %s11, 0
    %13 = vsyncpa [#allocation5], 0
    loop: start=0, step=1, limit=4
    $region2: #{net_forward.1} parent=1 // loop_pre_header
      _
    $region3: #{net_forward.1} parent=1 // loop_header
      %s15 = sphi 0, %s19
      %p16 = scmp.ge.s32.totalorder %s15, 4
      %s25 = sphi 0, %s27
      %s28 = sphi 0, %s25
      %s29 = sphi 0, %s28
      %s45 = sphi 0, %s29
      %s49 = sphi 0, %s49
      %s51 = sphi 0, %s49
      %s52 = sphi 0, %s51
      %s66 = sphi 0, %s52
      %s70 = sphi 0, %s70
      %s72 = sphi 0, %s70
      %s73 = sphi 0, %s72
      %s87 = sphi 0, %s73
      %s91 = sphi 0, %s91
      %s93 = sphi 0, %s91
      %s94 = sphi 0, %s93
      %s108 = sphi 0, %s94
      %s112 = sphi 0, %s112
      %s114 = sphi 0, %s112
      %s115 = sphi 0, %s114
      %s129 = sphi 0, %s115
      %s135 = sphi 0, %s137
      %s138 = sphi 0, %s135
      %s139 = sphi 0, %s138
      %s155 = sphi 0, %s139
    $region4: #{net_forward.1} parent=1 // loop_header_branch
      %18 = sbr.rel (%p16) target = $region8
    $region5: #{net_forward.1} parent=1 // loop_body
      %s20 = ssub.s32 %s15, 1
      %s21 = ssub.s32 %s15, 2
      %s22 = sadd.s32 %s15, 1
      %s23 = ssub.s32 %s15, %s22
      %p24 = scmp.eq.s32.totalorder %s23, 0
      %s26 = sadd.s32 %s25, 1
      %s27 = scalar_select %p24, %s25, %s26
      %p30 = pneg %p24
      %p31 = scmp.eq.s32.totalorder %s15, 1
      %p32 = por %p30, %p31
      %p33 = scmp.ne.s32.totalorder %s25, %s28
      %p34 = scmp.eq.s32.totalorder %s15, 0
      %p35 = por %p33, %p34
      %p36 = scmp.ne.s32.totalorder %s25, %s28
      %p37 = scmp.eq.s32.totalorder %s20, 1
      %p38 = por %p36, %p37
      %p39 = scmp.ne.s32.totalorder %s28, %s29
      %p40 = scmp.eq.s32.totalorder %s20, 0
      %p41 = por %p39, %p40
      %p42 = scmp.ne.s32.totalorder %s28, %s29
      %p43 = scmp.eq.s32.totalorder %s21, 1
      %p44 = por %p42, %p43
      %p46 = scmp.ne.s32.totalorder %s29, %s45
      %p47 = scmp.eq.s32.totalorder %s21, 0
      %p48 = por %p46, %p47
      %s50 = sadd.s32 %s49, 1
      %p53 = scmp.eq.s32.totalorder %s15, 1
      %p54 = scmp.ne.s32.totalorder %s49, %s51
      %p55 = scmp.eq.s32.totalorder %s15, 0
      %p56 = por %p54, %p55
      %p57 = scmp.ne.s32.totalorder %s49, %s51
      %p58 = scmp.eq.s32.totalorder %s20, 1
      %p59 = por %p57, %p58
      %p60 = scmp.ne.s32.totalorder %s51, %s52
      %p61 = scmp.eq.s32.totalorder %s20, 0
      %p62 = por %p60, %p61
      %p63 = scmp.ne.s32.totalorder %s51, %s52
      %p64 = scmp.eq.s32.totalorder %s21, 1
      %p65 = por %p63, %p64
      %p67 = scmp.ne.s32.totalorder %s52, %s66
      %p68 = scmp.eq.s32.totalorder %s21, 0
      %p69 = por %p67, %p68
      %s71 = sadd.s32 %s70, 1
      %p74 = scmp.eq.s32.totalorder %s15, 1
      %p75 = scmp.ne.s32.totalorder %s70, %s72
      %p76 = scmp.eq.s32.totalorder %s15, 0
      %p77 = por %p75, %p76
      %p78 = scmp.ne.s32.totalorder %s70, %s72
      %p79 = scmp.eq.s32.totalorder %s20, 1
      %p80 = por %p78, %p79
      %p81 = scmp.ne.s32.totalorder %s72, %s73
      %p82 = scmp.eq.s32.totalorder %s20, 0
      %p83 = por %p81, %p82
      %p84 = scmp.ne.s32.totalorder %s72, %s73
      %p85 = scmp.eq.s32.totalorder %s21, 1
      %p86 = por %p84, %p85
      %p88 = scmp.ne.s32.totalorder %s73, %s87
      %p89 = scmp.eq.s32.totalorder %s21, 0
      %p90 = por %p88, %p89
      %s92 = sadd.s32 %s91, 1
      %p95 = scmp.eq.s32.totalorder %s15, 1
      %p96 = scmp.ne.s32.totalorder %s91, %s93
      %p97 = scmp.eq.s32.totalorder %s15, 0
      %p98 = por %p96, %p97
      %p99 = scmp.ne.s32.totalorder %s91, %s93
      %p100 = scmp.eq.s32.totalorder %s20, 1
      %p101 = por %p99, %p100
      %p102 = scmp.ne.s32.totalorder %s93, %s94
      %p103 = scmp.eq.s32.totalorder %s20, 0
      %p104 = por %p102, %p103
      %p105 = scmp.ne.s32.totalorder %s93, %s94
      %p106 = scmp.eq.s32.totalorder %s21, 1
      %p107 = por %p105, %p106
      %p109 = scmp.ne.s32.totalorder %s94, %s108
      %p110 = scmp.eq.s32.totalorder %s21, 0
      %p111 = por %p109, %p110
      %s113 = sadd.s32 %s112, 1
      %p116 = scmp.eq.s32.totalorder %s15, 1
      %p117 = scmp.ne.s32.totalorder %s112, %s114
      %p118 = scmp.eq.s32.totalorder %s15, 0
      %p119 = por %p117, %p118
      %p120 = scmp.ne.s32.totalorder %s112, %s114
      %p121 = scmp.eq.s32.totalorder %s20, 1
      %p122 = por %p120, %p121
      %p123 = scmp.ne.s32.totalorder %s114, %s115
      %p124 = scmp.eq.s32.totalorder %s20, 0
      %p125 = por %p123, %p124
      %p126 = scmp.ne.s32.totalorder %s114, %s115
      %p127 = scmp.eq.s32.totalorder %s21, 1
      %p128 = por %p126, %p127
      %p130 = scmp.ne.s32.totalorder %s115, %s129
      %p131 = scmp.eq.s32.totalorder %s21, 0
      %p132 = por %p130, %p131
      %s133 = ssub.s32 %s15, %s22
      %p134 = scmp.eq.s32.totalorder %s133, 0
      %s136 = sadd.s32 %s135, 1
      %s137 = scalar_select %p134, %s135, %s136
      %p140 = pneg %p134
      %p141 = scmp.eq.s32.totalorder %s15, 1
      %p142 = por %p140, %p141
      %p143 = scmp.ne.s32.totalorder %s135, %s138
      %p144 = scmp.eq.s32.totalorder %s15, 0
      %p145 = por %p143, %p144
      %p146 = scmp.ne.s32.totalorder %s135, %s138
      %p147 = scmp.eq.s32.totalorder %s20, 1
      %p148 = por %p146, %p147
      %p149 = scmp.ne.s32.totalorder %s138, %s139
      %p150 = scmp.eq.s32.totalorder %s20, 0
      %p151 = por %p149, %p150
      %p152 = scmp.ne.s32.totalorder %s138, %s139
      %p153 = scmp.eq.s32.totalorder %s21, 1
      %p154 = por %p152, %p153
      %p156 = scmp.ne.s32.totalorder %s139, %s155
      %p157 = scmp.eq.s32.totalorder %s21, 0
      %p158 = por %p156, %p157
      %p159 = scmp.le.s32.totalorder 1, %s15
      %p160 = scmp.lt.s32.totalorder %s15, 3
      %p161 = pnand %p159, %p160
      %p162 = pneg %p161
      // Predicated region
      $region9: #{net_forward.1} parent=5 // pred_check
        _
      $region10: #{net_forward.1} parent=5 // pred_check_branch
        %164 = sbr.rel (%p161) target = $region12
      $region11: #{net_forward.1} parent=5 // pred_region
        %s165 = ssub.s32 %s15, 1
        // Predicated region
        $region13: #{net_forward.1} parent=11 // pred_check
          %p166 = pneg %p62
        $region14: #{net_forward.1} parent=11 // pred_check_branch
          %168 = sbr.rel (%p166) target = $region16
        $region15: #{net_forward.1} parent=11 // pred_region
          %s170 = ssub.s32 6272, 6272
          %171 = vsyncadd [#allocation5], %s170
          %s172 = sshll.u32 [#allocation4], 4
          %s173 = int_to_ptr.vmem [resolvable:$true] %s172
          %178 = dma.hbm_to_vmem [thread:$0]  %s1, 6272, %s173, [#allocation5], 64, 64, 4
        $region16: #{net_forward.1} parent=11 // pred_fallthru
          _
        // Predicated region
        $region17: #{net_forward.1} parent=11 // pred_check
          %p179 = pneg %p83
        $region18: #{net_forward.1} parent=11 // pred_check_branch
          %181 = sbr.rel (%p179) target = $region20
        $region19: #{net_forward.1} parent=11 // pred_region
          _
        $region20: #{net_forward.1} parent=11 // pred_fallthru
          _
        // Predicated region
        $region21: #{net_forward.1} parent=11 // pred_check
          %p182 = pneg %p104
        $region22: #{net_forward.1} parent=11 // pred_check_branch
          %184 = sbr.rel (%p182) target = $region24
        $region23: #{net_forward.1} parent=11 // pred_region
          %s186 = ssub.s32 1024, 1024
          %187 = vsyncadd [#allocation5], %s186
          %s188 = sshll.u32 [#allocation6], 4
          %s189 = int_to_ptr.vmem [resolvable:$true] %s188
          %194 = dma.hbm_to_vmem [thread:$0]  %s3, 1024, %s189, [#allocation5], 64, 64, 4
        $region24: #{net_forward.1} parent=11 // pred_fallthru
          _
        // Predicated region
        $region25: #{net_forward.1} parent=11 // pred_check
          %p195 = pneg %p125
        $region26: #{net_forward.1} parent=11 // pred_check_branch
          %197 = sbr.rel (%p195) target = $region28
        $region27: #{net_forward.1} parent=11 // pred_region
          _
        $region28: #{net_forward.1} parent=11 // pred_fallthru
          _
      $region12: #{net_forward.1} parent=5 // pred_fallthru
        _
      %p198 = scmp.lt.s32.totalorder %s15, 2
      // Predicated region
      $region29: #{net_forward.1} parent=5 // pred_check
        %p199 = pneg %p198
      $region30: #{net_forward.1} parent=5 // pred_check_branch
        %201 = sbr.rel (%p199) target = $region32
      $region31: #{net_forward.1} parent=5 // pred_region
        // Predicated region
        $region33: #{net_forward.1} parent=31 // pred_check
          %p202 = pneg %p35
        $region34: #{net_forward.1} parent=31 // pred_check_branch
          %204 = sbr.rel (%p202) target = $region36
        $region35: #{net_forward.1} parent=31 // pred_region
          %s205 = sand.u32 %s25, 1
          %s206 = scalar_lea.sflag [#allocation3], %s205
          %s207 = sand.u32 %s25, 1
          %s208 = smul.addr %s207, 728
          %s209 = scalar_lea.vmem [#allocation2], %s208
          %s210 = smul.u32 13, %s15
          %s211 = ssub.s32 25, %s210
          %p212 = scmp.lt.s32.totalorder %s211, 13
          %s213 = scalar_select %p212, %s211, 13
          %s214 = smul.u32 128, %s213
          %s215 = smul.u32 %s214, 7
          %s217 = ssub.s32 11648, %s215
          %218 = vsyncadd %s206, %s217
          %p219 = scmp.ne.s32.totalorder 0, %s215
          %s220 = smul.addr %s210, 7
          %s221 = smul.addr %s220, 128
          %s222 = scalar_lea.hbm %s0, %s221
          %s223 = smul.u32 56, %s213
          %s224 = sshll.u32 %s209, 4
          %s225 = int_to_ptr.vmem [resolvable:$true] %s224
          %s226 = sshll.u32 %s223, 4
          %230 = dma.hbm_to_vmem [thread:$0]  (%p219), %s222, %s226, %s225, %s206, 896, 896, 56
        $region36: #{net_forward.1} parent=31 // pred_fallthru
          _
      $region32: #{net_forward.1} parent=5 // pred_fallthru
        _
      %p231 = scmp.le.s32.totalorder 1, %s15
      %p232 = scmp.lt.s32.totalorder %s15, 3
      %p233 = pnand %p231, %p232
      %p234 = pneg %p233
      // Predicated region
      $region37: #{net_forward.1} parent=5 // pred_check
        _
      $region38: #{net_forward.1} parent=5 // pred_check_branch
        %236 = sbr.rel (%p233) target = $region40
      $region39: #{net_forward.1} parent=5 // pred_region
        %s237 = ssub.s32 %s15, 1
        %s238 = sand.u32 %s28, 1
        %s239 = scalar_lea.sflag [#allocation3], %s238
        %s240 = sand.u32 %s28, 1
        %s241 = smul.addr %s240, 728
        %s242 = scalar_lea.vmem [#allocation2], %s241
        // Predicated region
        $region41: #{net_forward.1} parent=39 // pred_check
          %p243 = pneg %p41
        $region42: #{net_forward.1} parent=39 // pred_check_branch
          %245 = sbr.rel (%p243) target = $region44
        $region43: #{net_forward.1} parent=39 // pred_region
          %246 = dma.done %s239, 11648
        $region44: #{net_forward.1} parent=39 // pred_fallthru
          _
        // Predicated region
        $region45: #{net_forward.1} parent=39 // pred_check
          %p247 = pneg %p62
        $region46: #{net_forward.1} parent=39 // pred_check_branch
          %249 = sbr.rel (%p247) target = $region48
        $region47: #{net_forward.1} parent=39 // pred_region
          %250 = dma.done [#allocation5], 6272
        $region48: #{net_forward.1} parent=39 // pred_fallthru
          _
        // Predicated region
        $region49: #{net_forward.1} parent=39 // pred_check
          %p251 = pneg %p104
        $region50: #{net_forward.1} parent=39 // pred_check_branch
          %253 = sbr.rel (%p251) target = $region52
        $region51: #{net_forward.1} parent=39 // pred_region
          %254 = dma.done [#allocation5], 1024
        $region52: #{net_forward.1} parent=39 // pred_fallthru
          _
        %s255 = sand.u32 %s28, 1
        %s256 = scalar_lea.sflag [#allocation3], %s255
        %s257 = sand.u32 %s28, 1
        %s258 = smul.addr %s257, 728
        %s259 = scalar_lea.vmem [#allocation2], %s258
        %p260 = pneg %p41
        %p261 = pneg %p38
        %p262 = pneg %p62
        %p263 = pneg %p59
        %p264 = pneg %p83
        %p265 = pneg %p80
        %p266 = pneg %p104
        %p267 = pneg %p101
        %p268 = pneg %p125
        %p269 = pneg %p122
        %p270 = pneg %p151
        %p271 = pneg %p148
        %s272 = sand.u32 %s138, 1
        %s273 = sand.u32 %s138, 1
        %s274 = smul.addr %s273, 52
        %s275 = scalar_lea.vmem [#allocation7], %s274
        %s276 = smul.u32 13, %s20
        %s277 = ssub.s32 25, %s276
        %p278 = scmp.lt.s32.totalorder %s277, 13
        %s279 = scalar_select %p278, %s277, 13
        %s280 = smul.u32 128, %s279
        %s281 = smul.u32 %s280, 7
        %s282 = smul.u32 13, %s20
        %s283 = ssub.s32 25, %s282
        %p284 = scmp.lt.s32.totalorder %s283, 13
        %s285 = scalar_select %p284, %s283, 13
        %s286 = smul.u32 64, %s285
        %v288 = vld [vmem:[%s242] sm:$0xff]
        %v289 = vld [vmem:[%s242 + $0x8] sm:$0xff]
        %v290 = vld [vmem:[%s242 + $0x10] sm:$0xff]
        %v291 = vld [vmem:[%s242 + $0x18] sm:$0xff]
        %v292 = vld [vmem:[%s242 + $0x20] sm:$0xff]
        %v293 = vld [vmem:[%s242 + $0x28] sm:$0xff]
        %v294 = vld [vmem:[%s242 + $0x30] sm:$0xff]
        %v295 = vld [vmem:[%s242 + $0x38] sm:$0xff]
        %v296 = vld [vmem:[%s242 + $0x40] sm:$0xff]
        %v297 = vld [vmem:[%s242 + $0x48] sm:$0xff]
        %v298 = vld [vmem:[%s242 + $0x50] sm:$0xff]
        %v299 = vld [vmem:[%s242 + $0x58] sm:$0xff]
        %v300 = vld [vmem:[%s242 + $0x60] sm:$0xff]
        %v301 = vld [vmem:[%s242 + $0x68] sm:$0xff]
        %v302 = vld [vmem:[%s242 + $0x70] sm:$0xff]
        %v303 = vld [vmem:[%s242 + $0x78] sm:$0xff]
        %v304 = vld [vmem:[%s242 + $0x80] sm:$0xff]
        %v305 = vld [vmem:[%s242 + $0x88] sm:$0xff]
        %v306 = vld [vmem:[%s242 + $0x90] sm:$0xff]
        %v307 = vld [vmem:[%s242 + $0x98] sm:$0xff]
        %v308 = vld [vmem:[%s242 + $0xa0] sm:$0xff]
        %v309 = vld [vmem:[%s242 + $0xa8] sm:$0xff]
        %v310 = vld [vmem:[%s242 + $0xb0] sm:$0xff]
        %v311 = vld [vmem:[%s242 + $0xb8] sm:$0xff]
        %v312 = vld [vmem:[%s242 + $0xc0] sm:$0xff]
        %v313 = vld [vmem:[%s242 + $0xc8] sm:$0xff]
        %v314 = vld [vmem:[%s242 + $0xd0] sm:$0xff]
        %v315 = vld [vmem:[%s242 + $0xd8] sm:$0xff]
        %v316 = vld [vmem:[%s242 + $0xe0] sm:$0xff]
        %v317 = vld [vmem:[%s242 + $0xe8] sm:$0xff]
        %v318 = vld [vmem:[%s242 + $0xf0] sm:$0xff]
        %v319 = vld [vmem:[%s242 + $0xf8] sm:$0xff]
        %v320 = vld [vmem:[%s242 + $0x100] sm:$0xff]
        %v321 = vld [vmem:[%s242 + $0x108] sm:$0xff]
        %v322 = vld [vmem:[%s242 + $0x110] sm:$0xff]
        %v323 = vld [vmem:[%s242 + $0x118] sm:$0xff]
        %v324 = vld [vmem:[%s242 + $0x120] sm:$0xff]
        %v325 = vld [vmem:[%s242 + $0x128] sm:$0xff]
        %v326 = vld [vmem:[%s242 + $0x130] sm:$0xff]
        %v327 = vld [vmem:[%s242 + $0x138] sm:$0xff]
        %v328 = vld [vmem:[%s242 + $0x140] sm:$0xff]
        %v329 = vld [vmem:[%s242 + $0x148] sm:$0xff]
        %v330 = vld [vmem:[%s242 + $0x150] sm:$0xff]
        %v331 = vld [vmem:[%s242 + $0x158] sm:$0xff]
        %v332 = vld [vmem:[%s242 + $0x160] sm:$0xff]
        %v333 = vld [vmem:[%s242 + $0x168] sm:$0xff]
        %v334 = vld [vmem:[%s242 + $0x170] sm:$0xff]
        %v335 = vld [vmem:[%s242 + $0x178] sm:$0xff]
        %v336 = vld [vmem:[%s242 + $0x180] sm:$0xff]
        %v337 = vld [vmem:[%s242 + $0x188] sm:$0xff]
        %v338 = vld [vmem:[%s242 + $0x190] sm:$0xff]
        %v339 = vld [vmem:[%s242 + $0x198] sm:$0xff]
        %v340 = vld [vmem:[%s242 + $0x1a0] sm:$0xff]
        %v341 = vld [vmem:[%s242 + $0x1a8] sm:$0xff]
        %v342 = vld [vmem:[%s242 + $0x1b0] sm:$0xff]
        %v343 = vld [vmem:[%s242 + $0x1b8] sm:$0xff]
        %v344 = vld [vmem:[%s242 + $0x1c0] sm:$0xff]
        %v345 = vld [vmem:[%s242 + $0x1c8] sm:$0xff]
        %v346 = vld [vmem:[%s242 + $0x1d0] sm:$0xff]
        %v347 = vld [vmem:[%s242 + $0x1d8] sm:$0xff]
        %v348 = vld [vmem:[%s242 + $0x1e0] sm:$0xff]
        %v349 = vld [vmem:[%s242 + $0x1e8] sm:$0xff]
        %v350 = vld [vmem:[%s242 + $0x1f0] sm:$0xff]
        %v351 = vld [vmem:[%s242 + $0x1f8] sm:$0xff]
        %v352 = vld [vmem:[%s242 + $0x200] sm:$0xff]
        %v353 = vld [vmem:[%s242 + $0x208] sm:$0xff]
        %v354 = vld [vmem:[%s242 + $0x210] sm:$0xff]
        %v355 = vld [vmem:[%s242 + $0x218] sm:$0xff]
        %v356 = vld [vmem:[%s242 + $0x220] sm:$0xff]
        %v357 = vld [vmem:[%s242 + $0x228] sm:$0xff]
        %v358 = vld [vmem:[%s242 + $0x230] sm:$0xff]
        %v359 = vld [vmem:[%s242 + $0x238] sm:$0xff]
        %v360 = vld [vmem:[%s242 + $0x240] sm:$0xff]
        %v361 = vld [vmem:[%s242 + $0x248] sm:$0xff]
        %v362 = vld [vmem:[%s242 + $0x250] sm:$0xff]
        %v363 = vld [vmem:[%s242 + $0x258] sm:$0xff]
        %v364 = vld [vmem:[%s242 + $0x260] sm:$0xff]
        %v365 = vld [vmem:[%s242 + $0x268] sm:$0xff]
        %v366 = vld [vmem:[%s242 + $0x270] sm:$0xff]
        %v367 = vld [vmem:[%s242 + $0x278] sm:$0xff]
        %v368 = vld [vmem:[%s242 + $0x280] sm:$0xff]
        %v369 = vld [vmem:[%s242 + $0x288] sm:$0xff]
        %v370 = vld [vmem:[%s242 + $0x290] sm:$0xff]
        %v371 = vld [vmem:[%s242 + $0x298] sm:$0xff]
        %v372 = vld [vmem:[%s242 + $0x2a0] sm:$0xff]
        %v373 = vld [vmem:[%s242 + $0x2a8] sm:$0xff]
        %v374 = vld [vmem:[%s242 + $0x2b0] sm:$0xff]
        %v375 = vld [vmem:[%s242 + $0x2b8] sm:$0xff]
        %v376 = vld [vmem:[%s242 + $0x2c0] sm:$0xff]
        %v377 = vld [vmem:[%s242 + $0x2c8] sm:$0xff]
        %v378 = vld [vmem:[%s242 + $0x2d0] sm:$0xff]
        %v379 = vpack.c.bf16 %v295, %v288
        %v380 = vpack.c.bf16 %v296, %v289
        %v381 = vpack.c.bf16 %v297, %v290
        %v382 = vpack.c.bf16 %v298, %v291
        %v383 = vpack.c.bf16 %v299, %v292
        %v384 = vpack.c.bf16 %v300, %v293
        %v385 = vpack.c.bf16 %v301, %v294
        %v386 = vpack.c.bf16 %v309, %v302
        %v387 = vpack.c.bf16 %v310, %v303
        %v388 = vpack.c.bf16 %v311, %v304
        %v389 = vpack.c.bf16 %v312, %v305
        %v390 = vpack.c.bf16 %v313, %v306
        %v391 = vpack.c.bf16 %v314, %v307
        %v392 = vpack.c.bf16 %v315, %v308
        %v393 = vpack.c.bf16 %v323, %v316
        %v394 = vpack.c.bf16 %v324, %v317
        %v395 = vpack.c.bf16 %v325, %v318
        %v396 = vpack.c.bf16 %v326, %v319
        %v397 = vpack.c.bf16 %v327, %v320
        %v398 = vpack.c.bf16 %v328, %v321
        %v399 = vpack.c.bf16 %v329, %v322
        %v400 = vpack.c.bf16 %v337, %v330
        %v401 = vpack.c.bf16 %v338, %v331
        %v402 = vpack.c.bf16 %v339, %v332
        %v403 = vpack.c.bf16 %v340, %v333
        %v404 = vpack.c.bf16 %v341, %v334
        %v405 = vpack.c.bf16 %v342, %v335
        %v406 = vpack.c.bf16 %v343, %v336
        %v407 = vpack.c.bf16 %v351, %v344
        %v408 = vpack.c.bf16 %v352, %v345
        %v409 = vpack.c.bf16 %v353, %v346
        %v410 = vpack.c.bf16 %v354, %v347
        %v411 = vpack.c.bf16 %v355, %v348
        %v412 = vpack.c.bf16 %v356, %v349
        %v413 = vpack.c.bf16 %v357, %v350
        %v414 = vpack.c.bf16 %v365, %v358
        %v415 = vpack.c.bf16 %v366, %v359
        %v416 = vpack.c.bf16 %v367, %v360
        %v417 = vpack.c.bf16 %v368, %v361
        %v418 = vpack.c.bf16 %v369, %v362
        %v419 = vpack.c.bf16 %v370, %v363
        %v420 = vpack.c.bf16 %v371, %v364
        %v421 = vpack.c.bf16 %v372, %v372
        %v422 = vpack.c.bf16 %v373, %v373
        %v423 = vpack.c.bf16 %v374, %v374
        %v424 = vpack.c.bf16 %v375, %v375
        %v425 = vpack.c.bf16 %v376, %v376
        %v426 = vpack.c.bf16 %v377, %v377
        %v427 = vpack.c.bf16 %v378, %v378
        %v428 = vld [vmem:[#allocation4] sm:$0xf]
        %v429 = vld [vmem:[#allocation4 + $0x4] sm:$0xf]
        %v430 = vld [vmem:[#allocation4 + $0x8] sm:$0xf]
        %v431 = vld [vmem:[#allocation4 + $0xc] sm:$0xf]
        %v432 = vld [vmem:[#allocation4 + $0x10] sm:$0xf]
        %v433 = vld [vmem:[#allocation4 + $0x14] sm:$0xf]
        %v434 = vld [vmem:[#allocation4 + $0x18] sm:$0xf]
        %v435 = vld [vmem:[#allocation4 + $0x1c] sm:$0xf]
        %v436 = vld [vmem:[#allocation4 + $0x20] sm:$0xf]
        %v437 = vld [vmem:[#allocation4 + $0x24] sm:$0xf]
        %v438 = vld [vmem:[#allocation4 + $0x28] sm:$0xf]
        %v439 = vld [vmem:[#allocation4 + $0x2c] sm:$0xf]
        %v440 = vld [vmem:[#allocation4 + $0x30] sm:$0xf]
        %v441 = vld [vmem:[#allocation4 + $0x34] sm:$0xf]
        %v442 = vld [vmem:[#allocation4 + $0x38] sm:$0xf]
        %v443 = vld [vmem:[#allocation4 + $0x3c] sm:$0xf]
        %v444 = vld [vmem:[#allocation4 + $0x40] sm:$0xf]
        %v445 = vld [vmem:[#allocation4 + $0x44] sm:$0xf]
        %v446 = vld [vmem:[#allocation4 + $0x48] sm:$0xf]
        %v447 = vld [vmem:[#allocation4 + $0x4c] sm:$0xf]
        %v448 = vld [vmem:[#allocation4 + $0x50] sm:$0xf]
        %v449 = vld [vmem:[#allocation4 + $0x54] sm:$0xf]
        %v450 = vld [vmem:[#allocation4 + $0x58] sm:$0xf]
        %v451 = vld [vmem:[#allocation4 + $0x5c] sm:$0xf]
        %v452 = vld [vmem:[#allocation4 + $0x60] sm:$0xf]
        %v453 = vld [vmem:[#allocation4 + $0x64] sm:$0xf]
        %v454 = vld [vmem:[#allocation4 + $0x68] sm:$0xf]
        %v455 = vld [vmem:[#allocation4 + $0x6c] sm:$0xf]
        %v456 = vld [vmem:[#allocation4 + $0x70] sm:$0xf]
        %v457 = vld [vmem:[#allocation4 + $0x74] sm:$0xf]
        %v458 = vld [vmem:[#allocation4 + $0x78] sm:$0xf]
        %v459 = vld [vmem:[#allocation4 + $0x7c] sm:$0xf]
        %v460 = vld [vmem:[#allocation4 + $0x80] sm:$0xf]
        %v461 = vld [vmem:[#allocation4 + $0x84] sm:$0xf]
        %v462 = vld [vmem:[#allocation4 + $0x88] sm:$0xf]
        %v463 = vld [vmem:[#allocation4 + $0x8c] sm:$0xf]
        %v464 = vld [vmem:[#allocation4 + $0x90] sm:$0xf]
        %v465 = vld [vmem:[#allocation4 + $0x94] sm:$0xf]
        %v466 = vld [vmem:[#allocation4 + $0x98] sm:$0xf]
        %v467 = vld [vmem:[#allocation4 + $0x9c] sm:$0xf]
        %v468 = vld [vmem:[#allocation4 + $0xa0] sm:$0xf]
        %v469 = vld [vmem:[#allocation4 + $0xa4] sm:$0xf]
        %v470 = vld [vmem:[#allocation4 + $0xa8] sm:$0xf]
        %v471 = vld [vmem:[#allocation4 + $0xac] sm:$0xf]
        %v472 = vld [vmem:[#allocation4 + $0xb0] sm:$0xf]
        %v473 = vld [vmem:[#allocation4 + $0xb4] sm:$0xf]
        %v474 = vld [vmem:[#allocation4 + $0xb8] sm:$0xf]
        %v475 = vld [vmem:[#allocation4 + $0xbc] sm:$0xf]
        %v476 = vld [vmem:[#allocation4 + $0xc0] sm:$0xf]
        %v477 = vld [vmem:[#allocation4 + $0xc4] sm:$0xf]
        %v478 = vld [vmem:[#allocation4 + $0xc8] sm:$0xf]
        %v479 = vld [vmem:[#allocation4 + $0xcc] sm:$0xf]
        %v480 = vld [vmem:[#allocation4 + $0xd0] sm:$0xf]
        %v481 = vld [vmem:[#allocation4 + $0xd4] sm:$0xf]
        %v482 = vld [vmem:[#allocation4 + $0xd8] sm:$0xf]
        %v483 = vld [vmem:[#allocation4 + $0xdc] sm:$0xf]
        %v484 = vld [vmem:[#allocation4 + $0xe0] sm:$0xf]
        %v485 = vld [vmem:[#allocation4 + $0xe4] sm:$0xf]
        %v486 = vld [vmem:[#allocation4 + $0xe8] sm:$0xf]
        %v487 = vld [vmem:[#allocation4 + $0xec] sm:$0xf]
        %v488 = vld [vmem:[#allocation4 + $0xf0] sm:$0xf]
        %v489 = vld [vmem:[#allocation4 + $0xf4] sm:$0xf]
        %v490 = vld [vmem:[#allocation4 + $0xf8] sm:$0xf]
        %v491 = vld [vmem:[#allocation4 + $0xfc] sm:$0xf]
        %v492 = vld [vmem:[#allocation4 + $0x100] sm:$0xf]
        %v493 = vld [vmem:[#allocation4 + $0x104] sm:$0xf]
        %v494 = vld [vmem:[#allocation4 + $0x108] sm:$0xf]
        %v495 = vld [vmem:[#allocation4 + $0x10c] sm:$0xf]
        %v496 = vld [vmem:[#allocation4 + $0x110] sm:$0xf]
        %v497 = vld [vmem:[#allocation4 + $0x114] sm:$0xf]
        %v498 = vld [vmem:[#allocation4 + $0x118] sm:$0xf]
        %v499 = vld [vmem:[#allocation4 + $0x11c] sm:$0xf]
        %v500 = vld [vmem:[#allocation4 + $0x120] sm:$0xf]
        %v501 = vld [vmem:[#allocation4 + $0x124] sm:$0xf]
        %v502 = vld [vmem:[#allocation4 + $0x128] sm:$0xf]
        %v503 = vld [vmem:[#allocation4 + $0x12c] sm:$0xf]
        %v504 = vld [vmem:[#allocation4 + $0x130] sm:$0xf]
        %v505 = vld [vmem:[#allocation4 + $0x134] sm:$0xf]
        %v506 = vld [vmem:[#allocation4 + $0x138] sm:$0xf]
        %v507 = vld [vmem:[#allocation4 + $0x13c] sm:$0xf]
        %v508 = vld [vmem:[#allocation4 + $0x140] sm:$0xf]
        %v509 = vld [vmem:[#allocation4 + $0x144] sm:$0xf]
        %v510 = vld [vmem:[#allocation4 + $0x148] sm:$0xf]
        %v511 = vld [vmem:[#allocation4 + $0x14c] sm:$0xf]
        %v512 = vld [vmem:[#allocation4 + $0x150] sm:$0xf]
        %v513 = vld [vmem:[#allocation4 + $0x154] sm:$0xf]
        %v514 = vld [vmem:[#allocation4 + $0x158] sm:$0xf]
        %v515 = vld [vmem:[#allocation4 + $0x15c] sm:$0xf]
        %v516 = vld [vmem:[#allocation4 + $0x160] sm:$0xf]
        %v517 = vld [vmem:[#allocation4 + $0x164] sm:$0xf]
        %v518 = vld [vmem:[#allocation4 + $0x168] sm:$0xf]
        %v519 = vld [vmem:[#allocation4 + $0x16c] sm:$0xf]
        %v520 = vld [vmem:[#allocation4 + $0x170] sm:$0xf]
        %v521 = vld [vmem:[#allocation4 + $0x174] sm:$0xf]
        %v522 = vld [vmem:[#allocation4 + $0x178] sm:$0xf]
        %v523 = vld [vmem:[#allocation4 + $0x17c] sm:$0xf]
        %v524 = vld [vmem:[#allocation4 + $0x180] sm:$0xf]
        %v525 = vld [vmem:[#allocation4 + $0x184] sm:$0xf]
        %v526 = vld [vmem:[%s2] sm:$0x1]
        %v528 = vlaneseq
        %v529 = vshrl.u32 %v528, 7
        %v530 = vsub.s32 0, %v529
        %v531 = vrot.slane %v526, %v530
        %v631 = vunpack.c.l.b16 %v428
        %v632 = vunpack.c.l.b16 %v429
        %v633 = vunpack.c.l.b16 %v430
        %v634 = vunpack.c.l.b16 %v431
        %v635 = vunpack.c.l.b16 %v432
        %v636 = vunpack.c.l.b16 %v433
        %v637 = vunpack.c.l.b16 %v434
        %v638 = vunpack.c.l.b16 %v435
        %v639 = vunpack.c.l.b16 %v436
        %v640 = vunpack.c.l.b16 %v437
        %v641 = vunpack.c.l.b16 %v438
        %v642 = vunpack.c.l.b16 %v439
        %v643 = vunpack.c.l.b16 %v440
        %v644 = vunpack.c.l.b16 %v441
        %v645 = vunpack.c.l.b16 %v442
        %v646 = vunpack.c.l.b16 %v443
        %v647 = vunpack.c.l.b16 %v444
        %v648 = vunpack.c.l.b16 %v445
        %v649 = vunpack.c.l.b16 %v446
        %v650 = vunpack.c.l.b16 %v447
        %v651 = vunpack.c.l.b16 %v448
        %v652 = vunpack.c.l.b16 %v449
        %v653 = vunpack.c.l.b16 %v450
        %v654 = vunpack.c.l.b16 %v451
        %v655 = vunpack.c.l.b16 %v452
        %v656 = vunpack.c.l.b16 %v453
        %v657 = vunpack.c.l.b16 %v454
        %v658 = vunpack.c.l.b16 %v455
        %v659 = vunpack.c.l.b16 %v456
        %v660 = vunpack.c.l.b16 %v457
        %v661 = vunpack.c.l.b16 %v458
        %v662 = vunpack.c.l.b16 %v459
        %v663 = vunpack.c.l.b16 %v460
        %v664 = vunpack.c.l.b16 %v461
        %v665 = vunpack.c.l.b16 %v462
        %v666 = vunpack.c.l.b16 %v463
        %v667 = vunpack.c.l.b16 %v464
        %v668 = vunpack.c.l.b16 %v465
        %v669 = vunpack.c.l.b16 %v466
        %v670 = vunpack.c.l.b16 %v467
        %v671 = vunpack.c.l.b16 %v468
        %v672 = vunpack.c.l.b16 %v469
        %v673 = vunpack.c.l.b16 %v470
        %v674 = vunpack.c.l.b16 %v471
        %v675 = vunpack.c.l.b16 %v472
        %v676 = vunpack.c.l.b16 %v473
        %v677 = vunpack.c.l.b16 %v474
        %v678 = vunpack.c.l.b16 %v475
        %v679 = vunpack.c.l.b16 %v476
        %v680 = vunpack.c.l.b16 %v477
        %v681 = vunpack.c.l.b16 %v478
        %v682 = vunpack.c.l.b16 %v479
        %v683 = vunpack.c.l.b16 %v480
        %v684 = vunpack.c.l.b16 %v481
        %v685 = vunpack.c.l.b16 %v482
        %v686 = vunpack.c.l.b16 %v483
        %v687 = vunpack.c.l.b16 %v484
        %v688 = vunpack.c.l.b16 %v485
        %v689 = vunpack.c.l.b16 %v486
        %v690 = vunpack.c.l.b16 %v487
        %v691 = vunpack.c.l.b16 %v488
        %v692 = vunpack.c.l.b16 %v489
        %v693 = vunpack.c.l.b16 %v490
        %v694 = vunpack.c.l.b16 %v491
        %v695 = vunpack.c.l.b16 %v492
        %v696 = vunpack.c.l.b16 %v493
        %v697 = vunpack.c.l.b16 %v494
        %v698 = vunpack.c.l.b16 %v495
        %v699 = vunpack.c.l.b16 %v496
        %v700 = vunpack.c.l.b16 %v497
        %v701 = vunpack.c.l.b16 %v498
        %v702 = vunpack.c.l.b16 %v499
        %v703 = vunpack.c.l.b16 %v500
        %v704 = vunpack.c.l.b16 %v501
        %v705 = vunpack.c.l.b16 %v502
        %v706 = vunpack.c.l.b16 %v503
        %v707 = vunpack.c.l.b16 %v504
        %v708 = vunpack.c.l.b16 %v505
        %v709 = vunpack.c.l.b16 %v506
        %v710 = vunpack.c.l.b16 %v507
        %v711 = vunpack.c.l.b16 %v508
        %v712 = vunpack.c.l.b16 %v509
        %v713 = vunpack.c.l.b16 %v510
        %v714 = vunpack.c.l.b16 %v511
        %v715 = vunpack.c.l.b16 %v512
        %v716 = vunpack.c.l.b16 %v513
        %v717 = vunpack.c.l.b16 %v514
        %v718 = vunpack.c.l.b16 %v515
        %v719 = vunpack.c.l.b16 %v516
        %v720 = vunpack.c.l.b16 %v517
        %v721 = vunpack.c.l.b16 %v518
        %v722 = vunpack.c.l.b16 %v519
        %v723 = vunpack.c.l.b16 %v520
        %v724 = vunpack.c.l.b16 %v521
        %v725 = vunpack.c.l.b16 %v522
        %v726 = vunpack.c.l.b16 %v523
        %v727 = vunpack.c.l.b16 %v524
        %v728 = vunpack.c.l.b16 %v525
        %v729 = vpack.c.b16 %v632, %v631
        %v730 = vpack.c.b16 %v634, %v633
        %v731 = vpack.c.b16 %v636, %v635
        %v732 = vpack.c.b16 %v638, %v637
        %v733 = vpack.c.b16 %v640, %v639
        %v734 = vpack.c.b16 %v642, %v641
        %v735 = vpack.c.b16 %v644, %v643
        %v736 = vpack.c.b16 %v646, %v645
        %v737 = vpack.c.b16 %v648, %v647
        %v738 = vpack.c.b16 %v650, %v649
        %v739 = vpack.c.b16 %v652, %v651
        %v740 = vpack.c.b16 %v654, %v653
        %v741 = vpack.c.b16 %v656, %v655
        %v742 = vpack.c.b16 %v658, %v657
        %v743 = vpack.c.b16 %v660, %v659
        %v744 = vpack.c.b16 %v662, %v661
        %v745 = vpack.c.b16 %v664, %v663
        %v746 = vpack.c.b16 %v666, %v665
        %v747 = vpack.c.b16 %v668, %v667
        %v748 = vpack.c.b16 %v670, %v669
        %v749 = vpack.c.b16 %v672, %v671
        %v750 = vpack.c.b16 %v674, %v673
        %v751 = vpack.c.b16 %v676, %v675
        %v752 = vpack.c.b16 %v678, %v677
        %v753 = vpack.c.b16 %v680, %v679
        %v754 = vpack.c.b16 %v682, %v681
        %v755 = vpack.c.b16 %v684, %v683
        %v756 = vpack.c.b16 %v686, %v685
        %v757 = vpack.c.b16 %v688, %v687
        %v758 = vpack.c.b16 %v690, %v689
        %v759 = vpack.c.b16 %v692, %v691
        %v760 = vpack.c.b16 %v694, %v693
        %v761 = vpack.c.b16 %v696, %v695
        %v762 = vpack.c.b16 %v698, %v697
        %v763 = vpack.c.b16 %v700, %v699
        %v764 = vpack.c.b16 %v702, %v701
        %v765 = vpack.c.b16 %v704, %v703
        %v766 = vpack.c.b16 %v706, %v705
        %v767 = vpack.c.b16 %v708, %v707
        %v768 = vpack.c.b16 %v710, %v709
        %v769 = vpack.c.b16 %v712, %v711
        %v770 = vpack.c.b16 %v714, %v713
        %v771 = vpack.c.b16 %v716, %v715
        %v772 = vpack.c.b16 %v718, %v717
        %v773 = vpack.c.b16 %v720, %v719
        %v774 = vpack.c.b16 %v722, %v721
        %v775 = vpack.c.b16 %v724, %v723
        %v776 = vpack.c.b16 %v726, %v725
        %v777 = vpack.c.b16 %v728, %v727
        %vm827 = vcmask 130048
        %v829 = vsel %vm827, %v385, 0
        %v832 = vsel %vm827, %v392, 0
        %v835 = vsel %vm827, %v399, 0
        %v838 = vsel %vm827, %v406, 0
        %v841 = vsel %vm827, %v413, 0
        %v844 = vsel %vm827, %v420, 0
        %v847 = vsel %vm827, %v427, 0
        %849 = vmatprep.subr.bf16.mxu0 0
        %850 = vmatpush1.bf16.msra.mxu0 %v736
        %851 = vmatprep.subr.bf16.mxu0 0
        %852 = vmatpush1.bf16.msra.mxu0 %v735
        %853 = vmatprep.subr.bf16.mxu0 0
        %854 = vmatpush1.bf16.msra.mxu0 %v734
        %855 = vmatprep.subr.bf16.mxu0 0
        %856 = vmatpush1.bf16.msra.mxu0 %v733
        %857 = vmatprep.subr.bf16.mxu0 0
        %858 = vmatpush1.bf16.msra.mxu0 %v732
        %859 = vmatprep.subr.bf16.mxu0 0
        %860 = vmatpush1.bf16.msra.mxu0 %v731
        %861 = vmatprep.subr.bf16.mxu0 0
        %862 = vmatpush1.bf16.msra.mxu0 %v730
        %863 = vmatprep.subr.bf16.mxu0 0
        %864 = vmatpush1.bf16.msra.mxu0 %v729
        %865 = vmatprep.subr.bf16.mxu0 0
        %866 = vmatpush2.bf16.msra.mxu0 %v744
        %867 = vmatprep.subr.bf16.mxu0 0
        %868 = vmatpush2.bf16.msra.mxu0 %v743
        %869 = vmatprep.subr.bf16.mxu0 0
        %870 = vmatpush2.bf16.msra.mxu0 %v742
        %871 = vmatprep.subr.bf16.mxu0 0
        %872 = vmatpush2.bf16.msra.mxu0 %v741
        %873 = vmatprep.subr.bf16.mxu0 0
        %874 = vmatpush2.bf16.msra.mxu0 %v740
        %875 = vmatprep.subr.bf16.mxu0 0
        %876 = vmatpush2.bf16.msra.mxu0 %v739
        %877 = vmatprep.subr.bf16.mxu0 0
        %878 = vmatpush2.bf16.msra.mxu0 %v738
        %879 = vmatprep.subr.bf16.mxu0 0
        %880 = vmatpush2.bf16.msra.mxu0 %v737
        %881 = vmatprep.mubr.bf16.mxu0 %v380
        %882 = vmatmul.mubr.bf16.gmra.mxu0 %v379
        %v883 = vpop.f32.mrf.mxu0
        %v884 = vadd.f32 %v531, %v883
        %v885 = vpop.f32.mrf.mxu0
        %v886 = vpop.f32.mrf.mxu0
        %v887 = vadd.f32 %v531, %v886
        %v888 = vpop.f32.mrf.mxu0
        %889 = vmatprep.mubr.bf16.mxu0 %v387
        %890 = vmatmul.mubr.bf16.gmra.mxu0 %v386
        %v891 = vpop.f32.mrf.mxu0
        %v892 = vadd.f32 %v531, %v891
        %v893 = vpop.f32.mrf.mxu0
        %v894 = vpop.f32.mrf.mxu0
        %v895 = vadd.f32 %v531, %v894
        %v896 = vpop.f32.mrf.mxu0
        %897 = vmatprep.mubr.bf16.mxu0 %v394
        %898 = vmatmul.mubr.bf16.gmra.mxu0 %v393
        %v899 = vpop.f32.mrf.mxu0
        %v900 = vadd.f32 %v531, %v899
        %v901 = vpop.f32.mrf.mxu0
        %v902 = vpop.f32.mrf.mxu0
        %v903 = vadd.f32 %v531, %v902
        %v904 = vpop.f32.mrf.mxu0
        %905 = vmatprep.mubr.bf16.mxu0 %v401
        %906 = vmatmul.mubr.bf16.gmra.mxu0 %v400
        %v907 = vpop.f32.mrf.mxu0
        %v908 = vadd.f32 %v531, %v907
        %v909 = vpop.f32.mrf.mxu0
        %v910 = vpop.f32.mrf.mxu0
        %v911 = vadd.f32 %v531, %v910
        %v912 = vpop.f32.mrf.mxu0
        %913 = vmatprep.mubr.bf16.mxu0 %v408
        %914 = vmatmul.mubr.bf16.gmra.mxu0 %v407
        %v915 = vpop.f32.mrf.mxu0
        %v916 = vadd.f32 %v531, %v915
        %v917 = vpop.f32.mrf.mxu0
        %v918 = vpop.f32.mrf.mxu0
        %v919 = vadd.f32 %v531, %v918
        %v920 = vpop.f32.mrf.mxu0
        %921 = vmatprep.mubr.bf16.mxu0 %v415
        %922 = vmatmul.mubr.bf16.gmra.mxu0 %v414
        %v923 = vpop.f32.mrf.mxu0
        %v924 = vadd.f32 %v531, %v923
        %v925 = vpop.f32.mrf.mxu0
        %v926 = vpop.f32.mrf.mxu0
        %v927 = vadd.f32 %v531, %v926
        %v928 = vpop.f32.mrf.mxu0
        %929 = vmatprep.mubr.bf16.mxu0 %v422
        %930 = vmatmul.mubr.bf16.gmra.mxu0 %v421
        %v931 = vpop.f32.mrf.mxu0
        %v932 = vadd.f32 %v531, %v931
        %v933 = vpop.f32.mrf.mxu0
        %v934 = vpop.f32.mrf.mxu0
        %v935 = vpop.f32.mrf.mxu0
        %936 = vdwg.mxu0
        %937 = vmatprep.subr.bf16.mxu0 0
        %938 = vmatpush1.bf16.msra.mxu0 %v752
        %939 = vmatprep.subr.bf16.mxu0 0
        %940 = vmatpush1.bf16.msra.mxu0 %v751
        %941 = vmatprep.subr.bf16.mxu0 0
        %942 = vmatpush1.bf16.msra.mxu0 %v750
        %943 = vmatprep.subr.bf16.mxu0 0
        %944 = vmatpush1.bf16.msra.mxu0 %v749
        %945 = vmatprep.subr.bf16.mxu0 0
        %946 = vmatpush1.bf16.msra.mxu0 %v748
        %947 = vmatprep.subr.bf16.mxu0 0
        %948 = vmatpush1.bf16.msra.mxu0 %v747
        %949 = vmatprep.subr.bf16.mxu0 0
        %950 = vmatpush1.bf16.msra.mxu0 %v746
        %951 = vmatprep.subr.bf16.mxu0 0
        %952 = vmatpush1.bf16.msra.mxu0 %v745
        %953 = vmatprep.subr.bf16.mxu0 0
        %954 = vmatpush2.bf16.msra.mxu0 %v760
        %955 = vmatprep.subr.bf16.mxu0 0
        %956 = vmatpush2.bf16.msra.mxu0 %v759
        %957 = vmatprep.subr.bf16.mxu0 0
        %958 = vmatpush2.bf16.msra.mxu0 %v758
        %959 = vmatprep.subr.bf16.mxu0 0
        %960 = vmatpush2.bf16.msra.mxu0 %v757
        %961 = vmatprep.subr.bf16.mxu0 0
        %962 = vmatpush2.bf16.msra.mxu0 %v756
        %963 = vmatprep.subr.bf16.mxu0 0
        %964 = vmatpush2.bf16.msra.mxu0 %v755
        %965 = vmatprep.subr.bf16.mxu0 0
        %966 = vmatpush2.bf16.msra.mxu0 %v754
        %967 = vmatprep.subr.bf16.mxu0 0
        %968 = vmatpush2.bf16.msra.mxu0 %v753
        %969 = vmatprep.mubr.bf16.mxu0 %v382
        %970 = vmatmul.mubr.bf16.gmra.mxu0 %v381
        %v971 = vpop.f32.mrf.mxu0
        %v972 = vadd.f32 %v884, %v971
        %v973 = vpop.f32.mrf.mxu0
        %v974 = vpop.f32.mrf.mxu0
        %v975 = vadd.f32 %v887, %v974
        %v976 = vpop.f32.mrf.mxu0
        %977 = vmatprep.mubr.bf16.mxu0 %v389
        %978 = vmatmul.mubr.bf16.gmra.mxu0 %v388
        %v979 = vpop.f32.mrf.mxu0
        %v980 = vadd.f32 %v892, %v979
        %v981 = vpop.f32.mrf.mxu0
        %v982 = vpop.f32.mrf.mxu0
        %v983 = vadd.f32 %v895, %v982
        %v984 = vpop.f32.mrf.mxu0
        %985 = vmatprep.mubr.bf16.mxu0 %v396
        %986 = vmatmul.mubr.bf16.gmra.mxu0 %v395
        %v987 = vpop.f32.mrf.mxu0
        %v988 = vadd.f32 %v900, %v987
        %v989 = vpop.f32.mrf.mxu0
        %v990 = vpop.f32.mrf.mxu0
        %v991 = vadd.f32 %v903, %v990
        %v992 = vpop.f32.mrf.mxu0
        %993 = vmatprep.mubr.bf16.mxu0 %v403
        %994 = vmatmul.mubr.bf16.gmra.mxu0 %v402
        %v995 = vpop.f32.mrf.mxu0
        %v996 = vadd.f32 %v908, %v995
        %v997 = vpop.f32.mrf.mxu0
        %v998 = vpop.f32.mrf.mxu0
        %v999 = vadd.f32 %v911, %v998
        %v1000 = vpop.f32.mrf.mxu0
        %1001 = vmatprep.mubr.bf16.mxu0 %v410
        %1002 = vmatmul.mubr.bf16.gmra.mxu0 %v409
        %v1003 = vpop.f32.mrf.mxu0
        %v1004 = vadd.f32 %v916, %v1003
        %v1005 = vpop.f32.mrf.mxu0
        %v1006 = vpop.f32.mrf.mxu0
        %v1007 = vadd.f32 %v919, %v1006
        %v1008 = vpop.f32.mrf.mxu0
        %1009 = vmatprep.mubr.bf16.mxu0 %v417
        %1010 = vmatmul.mubr.bf16.gmra.mxu0 %v416
        %v1011 = vpop.f32.mrf.mxu0
        %v1012 = vadd.f32 %v924, %v1011
        %v1013 = vpop.f32.mrf.mxu0
        %v1014 = vpop.f32.mrf.mxu0
        %v1015 = vadd.f32 %v927, %v1014
        %v1016 = vpop.f32.mrf.mxu0
        %1017 = vmatprep.mubr.bf16.mxu0 %v424
        %1018 = vmatmul.mubr.bf16.gmra.mxu0 %v423
        %v1019 = vpop.f32.mrf.mxu0
        %v1020 = vadd.f32 %v932, %v1019
        %v1021 = vpop.f32.mrf.mxu0
        %v1022 = vpop.f32.mrf.mxu0
        %v1023 = vpop.f32.mrf.mxu0
        %1024 = vdwg.mxu0
        %1025 = vmatprep.subr.bf16.mxu0 0
        %1026 = vmatpush1.bf16.msra.mxu0 %v768
        %1027 = vmatprep.subr.bf16.mxu0 0
        %1028 = vmatpush1.bf16.msra.mxu0 %v767
        %1029 = vmatprep.subr.bf16.mxu0 0
        %1030 = vmatpush1.bf16.msra.mxu0 %v766
        %1031 = vmatprep.subr.bf16.mxu0 0
        %1032 = vmatpush1.bf16.msra.mxu0 %v765
        %1033 = vmatprep.subr.bf16.mxu0 0
        %1034 = vmatpush1.bf16.msra.mxu0 %v764
        %1035 = vmatprep.subr.bf16.mxu0 0
        %1036 = vmatpush1.bf16.msra.mxu0 %v763
        %1037 = vmatprep.subr.bf16.mxu0 0
        %1038 = vmatpush1.bf16.msra.mxu0 %v762
        %1039 = vmatprep.subr.bf16.mxu0 0
        %1040 = vmatpush1.bf16.msra.mxu0 %v761
        %1041 = vmatprep.subr.bf16.mxu0 0
        %1042 = vmatpush2.bf16.msra.mxu0 %v776
        %1043 = vmatprep.subr.bf16.mxu0 0
        %1044 = vmatpush2.bf16.msra.mxu0 %v775
        %1045 = vmatprep.subr.bf16.mxu0 0
        %1046 = vmatpush2.bf16.msra.mxu0 %v774
        %1047 = vmatprep.subr.bf16.mxu0 0
        %1048 = vmatpush2.bf16.msra.mxu0 %v773
        %1049 = vmatprep.subr.bf16.mxu0 0
        %1050 = vmatpush2.bf16.msra.mxu0 %v772
        %1051 = vmatprep.subr.bf16.mxu0 0
        %1052 = vmatpush2.bf16.msra.mxu0 %v771
        %1053 = vmatprep.subr.bf16.mxu0 0
        %1054 = vmatpush2.bf16.msra.mxu0 %v770
        %1055 = vmatprep.subr.bf16.mxu0 0
        %1056 = vmatpush2.bf16.msra.mxu0 %v769
        %1057 = vmatprep.mubr.bf16.mxu0 %v384
        %1058 = vmatmul.mubr.bf16.gmra.mxu0 %v383
        %v1059 = vpop.f32.mrf.mxu0
        %v1060 = vadd.f32 %v972, %v1059
        %v1061 = vpop.f32.mrf.mxu0
        %v1062 = vpop.f32.mrf.mxu0
        %v1063 = vadd.f32 %v975, %v1062
        %v1064 = vpop.f32.mrf.mxu0
        %1065 = vmatprep.mubr.bf16.mxu0 %v391
        %1066 = vmatmul.mubr.bf16.gmra.mxu0 %v390
        %v1067 = vpop.f32.mrf.mxu0
        %v1068 = vadd.f32 %v980, %v1067
        %v1069 = vpop.f32.mrf.mxu0
        %v1070 = vpop.f32.mrf.mxu0
        %v1071 = vadd.f32 %v983, %v1070
        %v1072 = vpop.f32.mrf.mxu0
        %1073 = vmatprep.mubr.bf16.mxu0 %v398
        %1074 = vmatmul.mubr.bf16.gmra.mxu0 %v397
        %v1075 = vpop.f32.mrf.mxu0
        %v1076 = vadd.f32 %v988, %v1075
        %v1077 = vpop.f32.mrf.mxu0
        %v1078 = vpop.f32.mrf.mxu0
        %v1079 = vadd.f32 %v991, %v1078
        %v1080 = vpop.f32.mrf.mxu0
        %1081 = vmatprep.mubr.bf16.mxu0 %v405
        %1082 = vmatmul.mubr.bf16.gmra.mxu0 %v404
        %v1083 = vpop.f32.mrf.mxu0
        %v1084 = vadd.f32 %v996, %v1083
        %v1085 = vpop.f32.mrf.mxu0
        %v1086 = vpop.f32.mrf.mxu0
        %v1087 = vadd.f32 %v999, %v1086
        %v1088 = vpop.f32.mrf.mxu0
        %1089 = vmatprep.mubr.bf16.mxu0 %v412
        %1090 = vmatmul.mubr.bf16.gmra.mxu0 %v411
        %v1091 = vpop.f32.mrf.mxu0
        %v1092 = vadd.f32 %v1004, %v1091
        %v1093 = vpop.f32.mrf.mxu0
        %v1094 = vpop.f32.mrf.mxu0
        %v1095 = vadd.f32 %v1007, %v1094
        %v1096 = vpop.f32.mrf.mxu0
        %1097 = vmatprep.mubr.bf16.mxu0 %v419
        %1098 = vmatmul.mubr.bf16.gmra.mxu0 %v418
        %v1099 = vpop.f32.mrf.mxu0
        %v1100 = vadd.f32 %v1012, %v1099
        %v1101 = vpop.f32.mrf.mxu0
        %v1102 = vpop.f32.mrf.mxu0
        %v1103 = vadd.f32 %v1015, %v1102
        %v1104 = vpop.f32.mrf.mxu0
        %1105 = vmatprep.mubr.bf16.mxu0 %v426
        %1106 = vmatmul.mubr.bf16.gmra.mxu0 %v425
        %v1107 = vpop.f32.mrf.mxu0
        %v1108 = vadd.f32 %v1020, %v1107
        %v1109 = vpop.f32.mrf.mxu0
        %v1110 = vpop.f32.mrf.mxu0
        %v1111 = vpop.f32.mrf.mxu0
        %1112 = vdwg.mxu0
        %1113 = vmatprep.subr.bf16.mxu0 0
        %1114 = vmatpush1.bf16.msra.mxu0 0
        %1115 = vmatprep.subr.bf16.mxu0 0
        %1116 = vmatpush1.bf16.msra.mxu0 0
        %1117 = vmatprep.subr.bf16.mxu0 0
        %1118 = vmatpush1.bf16.msra.mxu0 0
        %1119 = vmatprep.subr.bf16.mxu0 0
        %1120 = vmatpush1.bf16.msra.mxu0 0
        %1121 = vmatprep.subr.bf16.mxu0 0
        %1122 = vmatpush1.bf16.msra.mxu0 0
        %1123 = vmatprep.subr.bf16.mxu0 0
        %1124 = vmatpush1.bf16.msra.mxu0 0
        %1125 = vmatprep.subr.bf16.mxu0 0
        %1126 = vmatpush1.bf16.msra.mxu0 0
        %1127 = vmatprep.subr.bf16.mxu0 0
        %1128 = vmatpush1.bf16.msra.mxu0 %v777
        %1129 = vmatprep.subr.bf16.mxu0 0
        %1130 = vmatpush2.bf16.msra.mxu0 0
        %1131 = vmatprep.subr.bf16.mxu0 0
        %1132 = vmatpush2.bf16.msra.mxu0 0
        %1133 = vmatprep.subr.bf16.mxu0 0
        %1134 = vmatpush2.bf16.msra.mxu0 0
        %1135 = vmatprep.subr.bf16.mxu0 0
        %1136 = vmatpush2.bf16.msra.mxu0 0
        %1137 = vmatprep.subr.bf16.mxu0 0
        %1138 = vmatpush2.bf16.msra.mxu0 0
        %1139 = vmatprep.subr.bf16.mxu0 0
        %1140 = vmatpush2.bf16.msra.mxu0 0
        %1141 = vmatprep.subr.bf16.mxu0 0
        %1142 = vmatpush2.bf16.msra.mxu0 0
        %1143 = vmatprep.subr.bf16.mxu0 0
        %1144 = vmatpush2.bf16.msra.mxu0 0
        %1145 = vmatprep.mubr.bf16.mxu0 0
        %1146 = vmatmul.mubr.bf16.gmra.mxu0 %v829
        %v1147 = vpop.f32.mrf.mxu0
        %v1148 = vadd.f32 %v1060, %v1147
        %v1149 = vpop.f32.mrf.mxu0
        %v1150 = vpop.f32.mrf.mxu0
        %v1151 = vadd.f32 %v1063, %v1150
        %v1152 = vpop.f32.mrf.mxu0
        %1153 = vmatprep.mubr.bf16.mxu0 0
        %1154 = vmatmul.mubr.bf16.gmra.mxu0 %v832
        %v1155 = vpop.f32.mrf.mxu0
        %v1156 = vadd.f32 %v1068, %v1155
        %v1157 = vpop.f32.mrf.mxu0
        %v1158 = vpop.f32.mrf.mxu0
        %v1159 = vadd.f32 %v1071, %v1158
        %v1160 = vpop.f32.mrf.mxu0
        %1161 = vmatprep.mubr.bf16.mxu0 0
        %1162 = vmatmul.mubr.bf16.gmra.mxu0 %v835
        %v1163 = vpop.f32.mrf.mxu0
        %v1164 = vadd.f32 %v1076, %v1163
        %v1165 = vpop.f32.mrf.mxu0
        %v1166 = vpop.f32.mrf.mxu0
        %v1167 = vadd.f32 %v1079, %v1166
        %v1168 = vpop.f32.mrf.mxu0
        %1169 = vmatprep.mubr.bf16.mxu0 0
        %1170 = vmatmul.mubr.bf16.gmra.mxu0 %v838
        %v1171 = vpop.f32.mrf.mxu0
        %v1172 = vadd.f32 %v1084, %v1171
        %v1173 = vpop.f32.mrf.mxu0
        %v1174 = vpop.f32.mrf.mxu0
        %v1175 = vadd.f32 %v1087, %v1174
        %v1176 = vpop.f32.mrf.mxu0
        %1177 = vmatprep.mubr.bf16.mxu0 0
        %1178 = vmatmul.mubr.bf16.gmra.mxu0 %v841
        %v1179 = vpop.f32.mrf.mxu0
        %v1180 = vadd.f32 %v1092, %v1179
        %v1181 = vpop.f32.mrf.mxu0
        %v1182 = vpop.f32.mrf.mxu0
        %v1183 = vadd.f32 %v1095, %v1182
        %v1184 = vpop.f32.mrf.mxu0
        %1185 = vmatprep.mubr.bf16.mxu0 0
        %1186 = vmatmul.mubr.bf16.gmra.mxu0 %v844
        %v1187 = vpop.f32.mrf.mxu0
        %v1188 = vadd.f32 %v1100, %v1187
        %v1189 = vpop.f32.mrf.mxu0
        %v1190 = vpop.f32.mrf.mxu0
        %v1191 = vadd.f32 %v1103, %v1190
        %v1192 = vpop.f32.mrf.mxu0
        %1193 = vmatprep.mubr.bf16.mxu0 0
        %1194 = vmatmul.mubr.bf16.gmra.mxu0 %v847
        %v1195 = vpop.f32.mrf.mxu0
        %v1196 = vadd.f32 %v1108, %v1195
        %v1197 = vpop.f32.mrf.mxu0
        %v1198 = vpop.f32.mrf.mxu0
        %v1199 = vpop.f32.mrf.mxu0
        %1200 = vdwg.mxu0
        %v1201 = vmax.f32 %v1148, 0.0
        %v1202 = vmax.f32 %v1151, 0.0
        %v1203 = vmax.f32 %v1156, 0.0
        %v1204 = vmax.f32 %v1159, 0.0
        %v1205 = vmax.f32 %v1164, 0.0
        %v1206 = vmax.f32 %v1167, 0.0
        %v1207 = vmax.f32 %v1172, 0.0
        %v1208 = vmax.f32 %v1175, 0.0
        %v1209 = vmax.f32 %v1180, 0.0
        %v1210 = vmax.f32 %v1183, 0.0
        %v1211 = vmax.f32 %v1188, 0.0
        %v1212 = vmax.f32 %v1191, 0.0
        %v1213 = vmax.f32 %v1196, 0.0
        %v1214 = vpack.c.bf16 %v1202, %v1201
        %v1215 = vpack.c.bf16 %v1204, %v1203
        %v1216 = vpack.c.bf16 %v1206, %v1205
        %v1217 = vpack.c.bf16 %v1208, %v1207
        %v1218 = vpack.c.bf16 %v1210, %v1209
        %v1219 = vpack.c.bf16 %v1212, %v1211
        %v1220 = vpack.c.bf16 %v1213, %v1213
        %v1221 = vld [vmem:[#allocation6] sm:$0xf]
        %v1222 = vld [vmem:[#allocation6 + $0x4] sm:$0xf]
        %v1223 = vld [vmem:[#allocation6 + $0x8] sm:$0xf]
        %v1224 = vld [vmem:[#allocation6 + $0xc] sm:$0xf]
        %v1225 = vld [vmem:[#allocation6 + $0x10] sm:$0xf]
        %v1226 = vld [vmem:[#allocation6 + $0x14] sm:$0xf]
        %v1227 = vld [vmem:[#allocation6 + $0x18] sm:$0xf]
        %v1228 = vld [vmem:[#allocation6 + $0x1c] sm:$0xf]
        %v1229 = vld [vmem:[#allocation6 + $0x20] sm:$0xf]
        %v1230 = vld [vmem:[#allocation6 + $0x24] sm:$0xf]
        %v1231 = vld [vmem:[#allocation6 + $0x28] sm:$0xf]
        %v1232 = vld [vmem:[#allocation6 + $0x2c] sm:$0xf]
        %v1233 = vld [vmem:[#allocation6 + $0x30] sm:$0xf]
        %v1234 = vld [vmem:[#allocation6 + $0x34] sm:$0xf]
        %v1235 = vld [vmem:[#allocation6 + $0x38] sm:$0xf]
        %v1236 = vld [vmem:[#allocation6 + $0x3c] sm:$0xf]
        %v1237 = vld [vmem:[%s4] sm:$0x1]
        %v1239 = vlaneseq
        %v1240 = vshrl.u32 %v1239, 7
        %v1241 = vsub.s32 0, %v1240
        %v1242 = vrot.slane %v1237, %v1241
        %v1260 = vunpack.c.l.b16 %v1221
        %v1261 = vunpack.c.l.b16 %v1222
        %v1262 = vunpack.c.l.b16 %v1223
        %v1263 = vunpack.c.l.b16 %v1224
        %v1264 = vunpack.c.l.b16 %v1225
        %v1265 = vunpack.c.l.b16 %v1226
        %v1266 = vunpack.c.l.b16 %v1227
        %v1267 = vunpack.c.l.b16 %v1228
        %v1268 = vunpack.c.l.b16 %v1229
        %v1269 = vunpack.c.l.b16 %v1230
        %v1270 = vunpack.c.l.b16 %v1231
        %v1271 = vunpack.c.l.b16 %v1232
        %v1272 = vunpack.c.l.b16 %v1233
        %v1273 = vunpack.c.l.b16 %v1234
        %v1274 = vunpack.c.l.b16 %v1235
        %v1275 = vunpack.c.l.b16 %v1236
        %v1276 = vpack.c.b16 %v1261, %v1260
        %v1277 = vpack.c.b16 %v1263, %v1262
        %v1278 = vpack.c.b16 %v1265, %v1264
        %v1279 = vpack.c.b16 %v1267, %v1266
        %v1280 = vpack.c.b16 %v1269, %v1268
        %v1281 = vpack.c.b16 %v1271, %v1270
        %v1282 = vpack.c.b16 %v1273, %v1272
        %v1283 = vpack.c.b16 %v1275, %v1274
        %1292 = vmatprep.subr.bf16.mxu0 0
        %1293 = vmatpush1.bf16.msra.mxu0 %v1283
        %1294 = vmatprep.subr.bf16.mxu0 0
        %1295 = vmatpush1.bf16.msra.mxu0 %v1282
        %1296 = vmatprep.subr.bf16.mxu0 0
        %1297 = vmatpush1.bf16.msra.mxu0 %v1281
        %1298 = vmatprep.subr.bf16.mxu0 0
        %1299 = vmatpush1.bf16.msra.mxu0 %v1280
        %1300 = vmatprep.subr.bf16.mxu0 0
        %1301 = vmatpush1.bf16.msra.mxu0 %v1279
        %1302 = vmatprep.subr.bf16.mxu0 0
        %1303 = vmatpush1.bf16.msra.mxu0 %v1278
        %1304 = vmatprep.subr.bf16.mxu0 0
        %1305 = vmatpush1.bf16.msra.mxu0 %v1277
        %1306 = vmatprep.subr.bf16.mxu0 0
        %1307 = vmatpush1.bf16.msra.mxu0 %v1276
        %1308 = vmatprep.subr.bf16.mxu0 0
        %1309 = vmatpush2.bf16.msra.mxu0 0
        %1310 = vmatprep.subr.bf16.mxu0 0
        %1311 = vmatpush2.bf16.msra.mxu0 0
        %1312 = vmatprep.subr.bf16.mxu0 0
        %1313 = vmatpush2.bf16.msra.mxu0 0
        %1314 = vmatprep.subr.bf16.mxu0 0
        %1315 = vmatpush2.bf16.msra.mxu0 0
        %1316 = vmatprep.subr.bf16.mxu0 0
        %1317 = vmatpush2.bf16.msra.mxu0 0
        %1318 = vmatprep.subr.bf16.mxu0 0
        %1319 = vmatpush2.bf16.msra.mxu0 0
        %1320 = vmatprep.subr.bf16.mxu0 0
        %1321 = vmatpush2.bf16.msra.mxu0 0
        %1322 = vmatprep.subr.bf16.mxu0 0
        %1323 = vmatpush2.bf16.msra.mxu0 0
        %1324 = vmatprep.mubr.bf16.mxu0 0
        %1325 = vmatmul.mubr.bf16.gmra.mxu0 %v1214
        %v1326 = vpop.f32.mrf.mxu0
        %v1327 = vadd.f32 %v1242, %v1326
        %v1328 = vpop.f32.mrf.mxu0
        %v1329 = vpop.f32.mrf.mxu0
        %v1330 = vadd.f32 %v1242, %v1329
        %v1331 = vpop.f32.mrf.mxu0
        %1332 = vmatprep.mubr.bf16.mxu0 0
        %1333 = vmatmul.mubr.bf16.gmra.mxu0 %v1215
        %v1334 = vpop.f32.mrf.mxu0
        %v1335 = vadd.f32 %v1242, %v1334
        %v1336 = vpop.f32.mrf.mxu0
        %v1337 = vpop.f32.mrf.mxu0
        %v1338 = vadd.f32 %v1242, %v1337
        %v1339 = vpop.f32.mrf.mxu0
        %1340 = vmatprep.mubr.bf16.mxu0 0
        %1341 = vmatmul.mubr.bf16.gmra.mxu0 %v1216
        %v1342 = vpop.f32.mrf.mxu0
        %v1343 = vadd.f32 %v1242, %v1342
        %v1344 = vpop.f32.mrf.mxu0
        %v1345 = vpop.f32.mrf.mxu0
        %v1346 = vadd.f32 %v1242, %v1345
        %v1347 = vpop.f32.mrf.mxu0
        %1348 = vmatprep.mubr.bf16.mxu0 0
        %1349 = vmatmul.mubr.bf16.gmra.mxu0 %v1217
        %v1350 = vpop.f32.mrf.mxu0
        %v1351 = vadd.f32 %v1242, %v1350
        %v1352 = vpop.f32.mrf.mxu0
        %v1353 = vpop.f32.mrf.mxu0
        %v1354 = vadd.f32 %v1242, %v1353
        %v1355 = vpop.f32.mrf.mxu0
        %1356 = vmatprep.mubr.bf16.mxu0 0
        %1357 = vmatmul.mubr.bf16.gmra.mxu0 %v1218
        %v1358 = vpop.f32.mrf.mxu0
        %v1359 = vadd.f32 %v1242, %v1358
        %v1360 = vpop.f32.mrf.mxu0
        %v1361 = vpop.f32.mrf.mxu0
        %v1362 = vadd.f32 %v1242, %v1361
        %v1363 = vpop.f32.mrf.mxu0
        %1364 = vmatprep.mubr.bf16.mxu0 0
        %1365 = vmatmul.mubr.bf16.gmra.mxu0 %v1219
        %v1366 = vpop.f32.mrf.mxu0
        %v1367 = vadd.f32 %v1242, %v1366
        %v1368 = vpop.f32.mrf.mxu0
        %v1369 = vpop.f32.mrf.mxu0
        %v1370 = vadd.f32 %v1242, %v1369
        %v1371 = vpop.f32.mrf.mxu0
        %1372 = vmatprep.mubr.bf16.mxu0 0
        %1373 = vmatmul.mubr.bf16.gmra.mxu0 %v1220
        %v1374 = vpop.f32.mrf.mxu0
        %v1375 = vadd.f32 %v1242, %v1374
        %v1376 = vpop.f32.mrf.mxu0
        %v1377 = vpop.f32.mrf.mxu0
        %v1378 = vpop.f32.mrf.mxu0
        %1379 = vdwg.mxu0
        %v1380 = vpack.c.bf16 %v1330, %v1327
        %v1381 = vpack.c.bf16 %v1338, %v1335
        %v1382 = vpack.c.bf16 %v1346, %v1343
        %v1383 = vpack.c.bf16 %v1354, %v1351
        %v1384 = vpack.c.bf16 %v1362, %v1359
        %v1385 = vpack.c.bf16 %v1370, %v1367
        %v1386 = vpack.c.bf16 %v1375, %v1375
        %v1394 = vunpack.c.l.b16 %v1380
        %v1395 = vunpack.c.h.b16 %v1380
        %v1396 = vunpack.c.l.b16 %v1381
        %v1397 = vunpack.c.h.b16 %v1381
        %v1398 = vunpack.c.l.b16 %v1382
        %v1399 = vunpack.c.h.b16 %v1382
        %v1400 = vunpack.c.l.b16 %v1383
        %v1401 = vunpack.c.h.b16 %v1383
        %v1402 = vunpack.c.l.b16 %v1384
        %v1403 = vunpack.c.h.b16 %v1384
        %v1404 = vunpack.c.l.b16 %v1385
        %v1405 = vunpack.c.h.b16 %v1385
        %v1406 = vunpack.c.l.b16 %v1386
        %v1407 = vpack.c.b16 %v1394, %v1394
        %v1408 = vpack.c.b16 %v1395, %v1395
        %v1409 = vpack.c.b16 %v1396, %v1396
        %v1410 = vpack.c.b16 %v1397, %v1397
        %v1411 = vpack.c.b16 %v1398, %v1398
        %v1412 = vpack.c.b16 %v1399, %v1399
        %v1413 = vpack.c.b16 %v1400, %v1400
        %v1414 = vpack.c.b16 %v1401, %v1401
        %v1415 = vpack.c.b16 %v1402, %v1402
        %v1416 = vpack.c.b16 %v1403, %v1403
        %v1417 = vpack.c.b16 %v1404, %v1404
        %v1418 = vpack.c.b16 %v1405, %v1405
        %v1419 = vpack.c.b16 %v1406, %v1406
        %1433 = vst [vmem:[%s275] sm:$0xf] %v1407
        %1434 = vst [vmem:[%s275 + $0x4] sm:$0xf] %v1408
        %1435 = vst [vmem:[%s275 + $0x8] sm:$0xf] %v1409
        %1436 = vst [vmem:[%s275 + $0xc] sm:$0xf] %v1410
        %1437 = vst [vmem:[%s275 + $0x10] sm:$0xf] %v1411
        %1438 = vst [vmem:[%s275 + $0x14] sm:$0xf] %v1412
        %1439 = vst [vmem:[%s275 + $0x18] sm:$0xf] %v1413
        %1440 = vst [vmem:[%s275 + $0x1c] sm:$0xf] %v1414
        %1441 = vst [vmem:[%s275 + $0x20] sm:$0xf] %v1415
        %1442 = vst [vmem:[%s275 + $0x24] sm:$0xf] %v1416
        %1443 = vst [vmem:[%s275 + $0x28] sm:$0xf] %v1417
        %1444 = vst [vmem:[%s275 + $0x2c] sm:$0xf] %v1418
        %1445 = vst [vmem:[%s275 + $0x30] sm:$0xf] %v1419
        %s1446 = sand.u32 %s138, 1
        %s1447 = sand.u32 %s138, 1
        %s1448 = smul.addr %s1447, 52
        %s1449 = scalar_lea.vmem [#allocation7], %s1448
        // Predicated region
        $region53: #{net_forward.1} parent=39 // pred_check
          %p1450 = pneg %p148
        $region54: #{net_forward.1} parent=39 // pred_check_branch
          %1452 = sbr.rel (%p1450) target = $region56
        $region55: #{net_forward.1} parent=39 // pred_region
          %s1453 = smul.u32 13, %s20
          %s1454 = ssub.s32 25, %s1453
          %p1455 = scmp.lt.s32.totalorder %s1454, 13
          %s1456 = scalar_select %p1455, %s1454, 13
          %s1457 = smul.u32 64, %s1456
          %p1458 = scmp.ne.s32.totalorder 0, %s1457
          %s1459 = smul.addr %s1453, 4
          %s1460 = scalar_lea.vmem %s5, %s1459
          // Predicated region
          $region57: #{net_forward.1} parent=55 // pred_check
            %p1461 = pneg %p1458
          $region58: #{net_forward.1} parent=55 // pred_check_branch
            %1463 = sbr.rel (%p1461) target = $region60
          $region59: #{net_forward.1} parent=55 // pred_region
            // Predicated region
            $region61: #{net_forward.1} parent=59 // pred_check
              _
            $region62: #{net_forward.1} parent=59 // pred_check_branch
              %1465 = sbr.rel target = $region64
            $region63: #{net_forward.1} parent=59 // pred_region
              // Predicated region
              $region83: #{net_forward.1} parent=63 // pred_check
                _
              $region84: #{net_forward.1} parent=63 // pred_check_branch
                %1540 = sbr.rel (0) target = $region86
              $region85: #{net_forward.1} parent=63 // pred_region
                %s1542 = ssub.s32 16, 1
                %s1543 = sdiv.u32.pop %s1456, 13
                %s1544 = srem.u32.pop %s1456, 13
                // While loop
                $region87: #{net_forward.1} parent=85 // loop_pre_header
                  _
                $region88: #{net_forward.1} parent=85 // loop_header
                  %s1546 = sphi 0, %s1548
                  %p1547 = scmp.ge.s32.totalorder %s1546, %s1543
                  %s1551 = sphi 0, %s1582
                  %s1552 = sphi %s1449, %s1585
                  %s1553 = sphi %s1460, %s1586
                $region89: #{net_forward.1} parent=85 // loop_header_branch
                  %1550 = sbr.rel (%p1547) target = $region93
                $region90: #{net_forward.1} parent=85 // loop_body
                  %v1554 = vld [vmem:[%s1552] sm:%s1542]
                  %1555 = vst [vmem:[%s1553] sm:%s1542] %v1554
                  %v1556 = vld [vmem:[%s1552 + $0x4] sm:%s1542]
                  %1557 = vst [vmem:[%s1553 + $0x4] sm:%s1542] %v1556
                  %v1558 = vld [vmem:[%s1552 + $0x8] sm:%s1542]
                  %1559 = vst [vmem:[%s1553 + $0x8] sm:%s1542] %v1558
                  %v1560 = vld [vmem:[%s1552 + $0xc] sm:%s1542]
                  %1561 = vst [vmem:[%s1553 + $0xc] sm:%s1542] %v1560
                  %v1562 = vld [vmem:[%s1552 + $0x10] sm:%s1542]
                  %1563 = vst [vmem:[%s1553 + $0x10] sm:%s1542] %v1562
                  %v1564 = vld [vmem:[%s1552 + $0x14] sm:%s1542]
                  %1565 = vst [vmem:[%s1553 + $0x14] sm:%s1542] %v1564
                  %v1566 = vld [vmem:[%s1552 + $0x18] sm:%s1542]
                  %1567 = vst [vmem:[%s1553 + $0x18] sm:%s1542] %v1566
                  %v1568 = vld [vmem:[%s1552 + $0x1c] sm:%s1542]
                  %1569 = vst [vmem:[%s1553 + $0x1c] sm:%s1542] %v1568
                  %v1570 = vld [vmem:[%s1552 + $0x20] sm:%s1542]
                  %1571 = vst [vmem:[%s1553 + $0x20] sm:%s1542] %v1570
                  %v1572 = vld [vmem:[%s1552 + $0x24] sm:%s1542]
                  %1573 = vst [vmem:[%s1553 + $0x24] sm:%s1542] %v1572
                  %v1574 = vld [vmem:[%s1552 + $0x28] sm:%s1542]
                  %1575 = vst [vmem:[%s1553 + $0x28] sm:%s1542] %v1574
                  %v1576 = vld [vmem:[%s1552 + $0x2c] sm:%s1542]
                  %1577 = vst [vmem:[%s1553 + $0x2c] sm:%s1542] %v1576
                  %v1578 = vld [vmem:[%s1552 + $0x30] sm:%s1542]
                  %1579 = vst [vmem:[%s1553 + $0x30] sm:%s1542] %v1578
                  %s1580 = sadd.s32 1, %s1551
                  %p1581 = scmp.ge.s32.totalorder %s1580, %s1543
                  %s1582 = scalar_select %p1581, 0, %s1580
                  %s1583 = smul.u32 %s1582, 52
                  %s1584 = smul.u32 %s1582, 52
                  %s1585 = scalar_lea.vmem %s1449, %s1583 [#allocation7]
                  %s1586 = scalar_lea.vmem %s1460, %s1584
                $region91: #{net_forward.1} parent=85 // loop_footer
                  %s1548 = sadd.s32 %s1546, 1
                $region92: #{net_forward.1} parent=85 // loop_footer_branch
                  %1545 = sbr.rel target = $region88
                $region93: #{net_forward.1} parent=85 // loop_exit
                  _
                %s1587 = sdiv.u32.pop %s1456, 13
                %s1588 = srem.u32.pop %s1456, 13
                %s1589 = smul.u32 %s1587, 13
                %s1590 = smul.u32 4, %s1589
                %s1591 = scalar_lea.vmem %s1449, %s1590 [#allocation7]
                %s1592 = smul.u32 4, %s1589
                %s1593 = scalar_lea.vmem %s1460, %s1592
                // While loop
                $region94: #{net_forward.1} parent=85 // loop_pre_header
                  _
                $region95: #{net_forward.1} parent=85 // loop_header
                  %s1595 = sphi 0, %s1597
                  %p1596 = scmp.ge.s32.totalorder %s1595, %s1588
                  %s1600 = sphi 0, %s1607
                  %s1601 = sphi %s1591, %s1610
                  %s1602 = sphi %s1593, %s1611
                $region96: #{net_forward.1} parent=85 // loop_header_branch
                  %1599 = sbr.rel (%p1596) target = $region100
                $region97: #{net_forward.1} parent=85 // loop_body
                  %v1603 = vld [vmem:[%s1601] sm:%s1542]
                  %1604 = vst [vmem:[%s1602] sm:%s1542] %v1603
                  %s1605 = sadd.s32 1, %s1600
                  %p1606 = scmp.ge.s32.totalorder %s1605, %s1588
                  %s1607 = scalar_select %p1606, 0, %s1605
                  %s1608 = smul.u32 %s1607, 4
                  %s1609 = smul.u32 %s1607, 4
                  %s1610 = scalar_lea.vmem %s1591, %s1608 [#allocation7]
                  %s1611 = scalar_lea.vmem %s1593, %s1609
                $region98: #{net_forward.1} parent=85 // loop_footer
                  %s1597 = sadd.s32 %s1595, 1
                $region99: #{net_forward.1} parent=85 // loop_footer_branch
                  %1594 = sbr.rel target = $region95
                $region100: #{net_forward.1} parent=85 // loop_exit
                  _
              $region86: #{net_forward.1} parent=63 // pred_fallthru
                _
            $region64: #{net_forward.1} parent=59 // pred_fallthru
              _
            // Predicated region
            $region65: #{net_forward.1} parent=59 // pred_check
              _
            $region66: #{net_forward.1} parent=59 // pred_check_branch
              %1467 = sbr.rel (0) target = $region68
            $region67: #{net_forward.1} parent=59 // pred_region
              %s1469 = ssub.s32 16, 1
              %s1470 = sdiv.u32.pop %s1456, 13
              %s1471 = srem.u32.pop %s1456, 13
              // While loop
              $region69: #{net_forward.1} parent=67 // loop_pre_header
                _
              $region70: #{net_forward.1} parent=67 // loop_header
                %s1473 = sphi 0, %s1475
                %p1474 = scmp.ge.s32.totalorder %s1473, %s1470
                %s1478 = sphi 0, %s1509
                %s1479 = sphi %s1449, %s1512
                %s1480 = sphi %s1460, %s1513
              $region71: #{net_forward.1} parent=67 // loop_header_branch
                %1477 = sbr.rel (%p1474) target = $region75
              $region72: #{net_forward.1} parent=67 // loop_body
                %v1481 = vld [vmem:[%s1479] sm:%s1469]
                %1482 = vst [vmem:[%s1480] sm:%s1469] %v1481
                %v1483 = vld [vmem:[%s1479 + $0x4] sm:%s1469]
                %1484 = vst [vmem:[%s1480 + $0x4] sm:%s1469] %v1483
                %v1485 = vld [vmem:[%s1479 + $0x8] sm:%s1469]
                %1486 = vst [vmem:[%s1480 + $0x8] sm:%s1469] %v1485
                %v1487 = vld [vmem:[%s1479 + $0xc] sm:%s1469]
                %1488 = vst [vmem:[%s1480 + $0xc] sm:%s1469] %v1487
                %v1489 = vld [vmem:[%s1479 + $0x10] sm:%s1469]
                %1490 = vst [vmem:[%s1480 + $0x10] sm:%s1469] %v1489
                %v1491 = vld [vmem:[%s1479 + $0x14] sm:%s1469]
                %1492 = vst [vmem:[%s1480 + $0x14] sm:%s1469] %v1491
                %v1493 = vld [vmem:[%s1479 + $0x18] sm:%s1469]
                %1494 = vst [vmem:[%s1480 + $0x18] sm:%s1469] %v1493
                %v1495 = vld [vmem:[%s1479 + $0x1c] sm:%s1469]
                %1496 = vst [vmem:[%s1480 + $0x1c] sm:%s1469] %v1495
                %v1497 = vld [vmem:[%s1479 + $0x20] sm:%s1469]
                %1498 = vst [vmem:[%s1480 + $0x20] sm:%s1469] %v1497
                %v1499 = vld [vmem:[%s1479 + $0x24] sm:%s1469]
                %1500 = vst [vmem:[%s1480 + $0x24] sm:%s1469] %v1499
                %v1501 = vld [vmem:[%s1479 + $0x28] sm:%s1469]
                %1502 = vst [vmem:[%s1480 + $0x28] sm:%s1469] %v1501
                %v1503 = vld [vmem:[%s1479 + $0x2c] sm:%s1469]
                %1504 = vst [vmem:[%s1480 + $0x2c] sm:%s1469] %v1503
                %v1505 = vld [vmem:[%s1479 + $0x30] sm:%s1469]
                %1506 = vst [vmem:[%s1480 + $0x30] sm:%s1469] %v1505
                %s1507 = sadd.s32 1, %s1478
                %p1508 = scmp.ge.s32.totalorder %s1507, %s1470
                %s1509 = scalar_select %p1508, 0, %s1507
                %s1510 = smul.u32 %s1509, 52
                %s1511 = smul.u32 %s1509, 52
                %s1512 = scalar_lea.vmem %s1449, %s1510 [#allocation7]
                %s1513 = scalar_lea.vmem %s1460, %s1511
              $region73: #{net_forward.1} parent=67 // loop_footer
                %s1475 = sadd.s32 %s1473, 1
              $region74: #{net_forward.1} parent=67 // loop_footer_branch
                %1472 = sbr.rel target = $region70
              $region75: #{net_forward.1} parent=67 // loop_exit
                _
              %s1514 = sdiv.u32.pop %s1456, 13
              %s1515 = srem.u32.pop %s1456, 13
              %s1516 = smul.u32 %s1514, 13
              %s1517 = smul.u32 4, %s1516
              %s1518 = scalar_lea.vmem %s1449, %s1517 [#allocation7]
              %s1519 = smul.u32 4, %s1516
              %s1520 = scalar_lea.vmem %s1460, %s1519
              // While loop
              $region76: #{net_forward.1} parent=67 // loop_pre_header
                _
              $region77: #{net_forward.1} parent=67 // loop_header
                %s1522 = sphi 0, %s1524
                %p1523 = scmp.ge.s32.totalorder %s1522, %s1515
                %s1527 = sphi 0, %s1534
                %s1528 = sphi %s1518, %s1537
                %s1529 = sphi %s1520, %s1538
              $region78: #{net_forward.1} parent=67 // loop_header_branch
                %1526 = sbr.rel (%p1523) target = $region82
              $region79: #{net_forward.1} parent=67 // loop_body
                %v1530 = vld [vmem:[%s1528] sm:%s1469]
                %1531 = vst [vmem:[%s1529] sm:%s1469] %v1530
                %s1532 = sadd.s32 1, %s1527
                %p1533 = scmp.ge.s32.totalorder %s1532, %s1515
                %s1534 = scalar_select %p1533, 0, %s1532
                %s1535 = smul.u32 %s1534, 4
                %s1536 = smul.u32 %s1534, 4
                %s1537 = scalar_lea.vmem %s1518, %s1535 [#allocation7]
                %s1538 = scalar_lea.vmem %s1520, %s1536
              $region80: #{net_forward.1} parent=67 // loop_footer
                %s1524 = sadd.s32 %s1522, 1
              $region81: #{net_forward.1} parent=67 // loop_footer_branch
                %1521 = sbr.rel target = $region77
              $region82: #{net_forward.1} parent=67 // loop_exit
                _
            $region68: #{net_forward.1} parent=59 // pred_fallthru
              _
          $region60: #{net_forward.1} parent=55 // pred_fallthru
            _
          %1612 = vnop
        $region56: #{net_forward.1} parent=39 // pred_fallthru
          _
      $region40: #{net_forward.1} parent=5 // pred_fallthru
        _
      %p1613 = scmp.le.s32.totalorder 2, %s15
      // Predicated region
      $region101: #{net_forward.1} parent=5 // pred_check
        %p1614 = pneg %p1613
      $region102: #{net_forward.1} parent=5 // pred_check_branch
        %1616 = sbr.rel (%p1614) target = $region104
      $region103: #{net_forward.1} parent=5 // pred_region
        %s1617 = ssub.s32 %s15, 2
        // Predicated region
        $region105: #{net_forward.1} parent=103 // pred_check
          %p1618 = pneg %p154
        $region106: #{net_forward.1} parent=103 // pred_check_branch
          %1620 = sbr.rel (%p1618) target = $region108
        $region107: #{net_forward.1} parent=103 // pred_region
          %s1621 = sand.u32 %s139, 1
          %s1622 = sand.u32 %s139, 1
          %s1623 = smul.addr %s1622, 52
          %s1624 = scalar_lea.vmem [#allocation7], %s1623
        $region108: #{net_forward.1} parent=103 // pred_fallthru
          _
      $region104: #{net_forward.1} parent=5 // pred_fallthru
        _
    $region6: #{net_forward.1} parent=1 // loop_footer
      %s19 = sadd.s32 1, %s15
    $region7: #{net_forward.1} parent=1 // loop_footer_branch
      %14 = sbr.rel target = $region3
    $region8: #{net_forward.1} parent=1 // loop_exit
      _
    %1625 = vsyncpa [#allocation3], 1
    %s1626 = scalar_lea.sflag [#allocation3], 1
    %1627 = vsyncpa %s1626, 1
    %1628 = vsyncpa [#allocation5], 1

</llo_original>
